<compile_context>
chip_gen: v5e
topology: v5e:2x2
jax: 0.10.0
libtpu: 0.0.40
codegen_flags: <defaults>
</compile_context>

<pallas_src>
import math
import numpy as np
import jax
import jax.numpy as jnp
from jax import lax
from jax.experimental import pallas as pl
from jax.experimental.pallas import tpu as pltpu


# ---------------------------------------------------------------------------
# Packed-slab layout (row offsets 16-aligned so bf16 sublane tiles stay aligned)
# ---------------------------------------------------------------------------
def _round16(n):
    return ((n + 15) // 16) * 16


def slab_layout(D, H, A):
    G, QKV = 4 * H, 3 * A
    width = max(G, QKV, D)
    rows = {}
    r = 0
    for name, (nr, nc) in (('wih0', (D, G)), ('whh0', (H, G)), ('w1', (2 * H, G)),
                           ('wqkv', (H, QKV)), ('wfused', (A + H, D))):
        rows[name] = (r, nr, nc)
        r += _round16(nr)
    return rows, r, width


# ---------------------------------------------------------------------------
# Fused kernel factory: LSTM (2 layers) + last-query attention + folded projection
# ---------------------------------------------------------------------------
def make_temporal_encoder_kernel(B, T, D, H, A, rows):
    G, QKV = 4 * H, 3 * A
    inv_sqrt_a = 1.0 / math.sqrt(A)                       # compile-time constant
    r_ih0 = rows['wih0'][0]
    r_hh0 = rows['whh0'][0]
    r_w1 = rows['w1'][0]
    r_qkv = rows['wqkv'][0]
    r_fus = rows['wfused'][0]

    def kernel(x_ref, w_ref, b_ref, out_ref):
        f32, bf16 = jnp.float32, jnp.bfloat16

        # ---- static slab views (one prologue DMA per slab, zero-cost slicing) --------
        wih0 = w_ref[r_ih0:r_ih0 + D, 0:G]                # (D, 4H)   bf16
        whh0 = w_ref[r_hh0:r_hh0 + H, 0:G]                # (H, 4H)   bf16
        wih1 = w_ref[r_w1:r_w1 + H, 0:G]                  # (H, 4H)   bf16 (used at t=0 only)
        w1 = w_ref[r_w1:r_w1 + 2 * H, 0:G]                # (2H, 4H)  bf16 [wih1.T ; whh1.T]
        wqkv = w_ref[r_qkv:r_qkv + H, 0:QKV]              # (H, 3A)   bf16 [wq.T|wk.T|wv.T]
        wfus = w_ref[r_fus:r_fus + A + H, 0:D]            # (A+H, D)  bf16 [[wo.T@wp.T];[wp.T]]
        b0 = b_ref[0:1, 0:G]                              # (1, 4H) f32
        b1 = b_ref[1:2, 0:G]                              # (1, 4H) f32
        bqkv = b_ref[2:3, 0:QKV]                          # (1, 3A) f32
        bfus = b_ref[3:4, 0:D]                            # (1, D)  f32

        b1b = jnp.broadcast_to(b1, (B, G))                # hoisted bias broadcast

        # ---- layer-0 input->gate contribution for ALL timesteps: one MXU dot ---------
        x_flat = x_ref[...].astype(bf16)                  # (B*T, D), batch-major
        xg0 = (jnp.dot(x_flat, wih0, preferred_element_type=f32) + b0).reshape(B, T, G)
        xg0_ts = [xg0[:, t] for t in range(T)]            # per-step (B, 4H) slices

        def gate_act(gates, c_prev):
            # full-width sigmoid/tanh on the lane-dense (B, 4H) vreg, slice afterwards
            sg = jax.nn.sigmoid(gates)
            th = jnp.tanh(gates)
            i = sg[:, 0 * H:1 * H]
            f = sg[:, 1 * H:2 * H]
            g = th[:, 2 * H:3 * H]
            o = sg[:, 3 * H:4 * H]
            c_new = f * c_prev + i * g
            return o * jnp.tanh(c_new), c_new

        c0 = jnp.zeros((B, H), f32)
        c1 = jnp.zeros((B, H), f32)
        h0 = h1 = None
        hs = []
        # Fully-unrolled recurrence (T static & tiny): 2 dependent MXU dots per step.
        for t in range(T):
            if t == 0:
                g0 = xg0_ts[0]                            # h0_prev == 0: skip recurrent dot
            else:
                g0 = xg0_ts[t] + jnp.dot(h0.astype(bf16), whh0,
                                         preferred_element_type=f32)
            h0, c0 = gate_act(g0, c0)
            # TODO(synk): inter-layer dropout (p=0.1) is train-only; eval == identity.
            if t == 0:
                g1 = jnp.dot(h0.astype(bf16), wih1,       # h1_prev == 0: wih1 part only
                             preferred_element_type=f32) + b1b
            else:
                h01 = jnp.concatenate([h0, h1], axis=-1).astype(bf16)       # (B, 2H)
                g1 = jnp.dot(h01, w1, preferred_element_type=f32) + b1b     # fused layer-1
            h1, c1 = gate_act(g1, c1)
            hs.append(h1)

        h_last = h1                                       # (B, H) f32
        h_seq = jnp.concatenate(hs, axis=0).astype(bf16)  # (T*B, H) time-major

        # ---- fused Q/K/V projection: one MXU dot over the whole sequence -------------
        qkv = jnp.dot(h_seq, wqkv, preferred_element_type=f32) + bqkv       # (T*B, 3A)
        q = qkv[(T - 1) * B:T * B, 0:A]                   # (B, A)  last-step query only
        k_all = qkv[:, A:2 * A]                           # (T*B, A)
        v_all = qkv[:, 2 * A:3 * A]                       # (T*B, A)

        # ---- attention for the last timestep (only y[:, -1, :] feeds output_proj) ----
        k_ts = [k_all[t * B:(t + 1) * B, :] for t in range(T)]
        v_ts = [v_all[t * B:(t + 1) * B, :] for t in range(T)]
        s_ts = [jnp.sum(k_t * q, axis=-1, keepdims=True) * inv_sqrt_a for k_t in k_ts]
        m = s_ts[0]
        for t in range(1, T):
            m = jnp.maximum(m, s_ts[t])
        e_ts = [jnp.exp(s_t - m) for s_t in s_ts]
        denom = e_ts[0]
        num = e_ts[0] * v_ts[0]
        for t in range(1, T):
            denom = denom + e_ts[t]
            num = num + e_ts[t] * v_ts[t]
        att = num * pl.reciprocal(denom, approx=True)     # (B, A)

        # ---- folded (attention.output + residual) o output_proj: one tail dot --------
        tail = jnp.concatenate([att, h_last], axis=-1).astype(bf16)         # (B, A+H)
        out_ref[...] = jnp.dot(tail, wfus, preferred_element_type=f32) + bfus   # (B, D)

    return kernel


# ---------------------------------------------------------------------------
# One-time parameter prep: pack everything into one bf16 slab + one f32 bias slab
# ---------------------------------------------------------------------------
def prep_params(p, D, H, A):
    rows, total_rows, width = slab_layout(D, H, A)
    pn = {k: np.asarray(v, np.float32) for k, v in p.items()}

    slab = np.zeros((total_rows, width), np.float32)

    def put(name, mat):
        r0 = rows[name][0]
        nr, nc = mat.shape
        slab[r0:r0 + nr, :nc] = mat

    put('wih0', pn['wih0'].T)                                         # (D, 4H)
    put('whh0', pn['whh0'].T)                                         # (H, 4H)
    put('w1', np.concatenate([pn['wih1'].T, pn['whh1'].T], axis=0))   # (2H, 4H)
    put('wqkv', np.concatenate([pn['wq'].T, pn['wk'].T, pn['wv'].T], axis=1))   # (H, 3A)
    wo_wp = pn['wo'].T @ pn['wp'].T                                   # (A, D), composed in f32
    put('wfused', np.concatenate([wo_wp, pn['wp'].T], axis=0))        # (A+H, D)
    w_slab = jnp.asarray(slab, jnp.bfloat16)                          # single bf16 cast

    bias = np.zeros((4, width), np.float32)
    bias[0, :4 * H] = pn['bih0'] + pn['bhh0']
    bias[1, :4 * H] = pn['bih1'] + pn['bhh1']
    bias[2, :3 * A] = np.concatenate([pn['bq'], pn['bk'], pn['bv']])
    bias[3, :D] = pn['bo'] @ pn['wp'].T + pn['bp']                    # folded output bias
    b_slab = jnp.asarray(bias, jnp.float32)
    return w_slab, b_slab


# ---------------------------------------------------------------------------
# Forward wrapper (single grid-less pallas_call, everything VMEM-resident)
# ---------------------------------------------------------------------------
def build_forward(B, T, D, H, A):
    rows, _, _ = slab_layout(D, H, A)
    kernel = make_temporal_encoder_kernel(B, T, D, H, A, rows)
    vmem = pl.BlockSpec(memory_space=pltpu.MemorySpace.VMEM)

    @jax.jit
    def forward(x, w_slab, b_slab):
        # x: (B, T, D) batch-first (PyTorch batch_first=True); flattening is a free reshape.
        x_flat = x.reshape(B * T, D)
        return pl.pallas_call(
            kernel,
            out_shape=jax.ShapeDtypeStruct((B, D), jnp.float32),
            in_specs=[vmem, vmem, vmem],
            out_specs=vmem,
        )(x_flat, w_slab, b_slab)

    return forward


# ---------------------------------------------------------------------------
# Pure-JAX reference (f32, faithful to the PyTorch module in eval mode)
# ---------------------------------------------------------------------------
def reference_forward(x, p, attn_hidden):
    def lstm_layer_ref(xs, wih, whh, bih, bhh):
        B = xs.shape[0]
        H = whh.shape[1]

        def step(carry, xt):
            h, c = carry
            g = xt @ wih.T + bih + h @ whh.T + bhh
            i = jax.nn.sigmoid(g[:, :H])
            f = jax.nn.sigmoid(g[:, H:2 * H])
            gg = jnp.tanh(g[:, 2 * H:3 * H])
            o = jax.nn.sigmoid(g[:, 3 * H:])
            c = f * c + i * gg
            h = o * jnp.tanh(c)
            return (h, c), h

        init = (jnp.zeros((B, H), jnp.float32), jnp.zeros((B, H), jnp.float32))
        _, hs = lax.scan(step, init, jnp.transpose(xs, (1, 0, 2)))
        return jnp.transpose(hs, (1, 0, 2))

    h = lstm_layer_ref(x, p['wih0'], p['whh0'], p['bih0'], p['bhh0'])
    h = lstm_layer_ref(h, p['wih1'], p['whh1'], p['bih1'], p['bhh1'])

    q = h @ p['wq'].T + p['bq']
    k = h @ p['wk'].T + p['bk']
    v = h @ p['wv'].T + p['bv']
    s = jnp.einsum('bta,bsa->bts', q, k) / np.sqrt(attn_hidden)
    w = jax.nn.softmax(s, axis=-1)
    att = jnp.einsum('bts,bsa->bta', w, v)
    y = att @ p['wo'].T + p['bo'] + h
    return y[:, -1, :] @ p['wp'].T + p['bp']


# ---------------------------------------------------------------------------
if __name__ == "__main__":
    B, T = 2, 8          # batch, sequence length
    D = 8                # input_dim
    H = 32               # LSTM hidden_dim
    A = 64               # AttentionLayer hidden_dim (PyTorch default)

    key = jax.random.PRNGKey(0)
    keys = jax.random.split(key, 20)

    def uinit(k, shape, bound):
        return jax.random.uniform(k, shape, jnp.float32, -bound, bound)

    kH = 1.0 / math.sqrt(H)
    kA = 1.0 / math.sqrt(A)

    params = {
        # LSTM layer 0 (input_dim -> H)
        'wih0': uinit(keys[0], (4 * H, D), kH),
        'whh0': uinit(keys[1], (4 * H, H), kH),
        'bih0': uinit(keys[2], (4 * H,), kH),
        'bhh0': uinit(keys[3], (4 * H,), kH),
        # LSTM layer 1 (H -> H)
        'wih1': uinit(keys[4], (4 * H, H), kH),
        'whh1': uinit(keys[5], (4 * H, H), kH),
        'bih1': uinit(keys[6], (4 * H,), kH),
        'bhh1': uinit(keys[7], (4 * H,), kH),
        # Attention linears (PyTorch Linear weight shape: (out, in))
        'wq': uinit(keys[8], (A, H), kH), 'bq': uinit(keys[9], (A,), kH),
        'wk': uinit(keys[10], (A, H), kH), 'bk': uinit(keys[11], (A,), kH),
        'wv': uinit(keys[12], (A, H), kH), 'bv': uinit(keys[13], (A,), kH),
        'wo': uinit(keys[14], (H, A), kA), 'bo': uinit(keys[15], (H,), kA),
        # output_proj (H -> input_dim)
        'wp': uinit(keys[16], (D, H), kH), 'bp': uinit(keys[17], (D,), kH),
    }

    x = jax.random.normal(keys[18], (B, T, D), jnp.float32)

    w_slab, b_slab = prep_params(params, D, H, A)      # one-time packing / bf16 cast
    forward = build_forward(B, T, D, H, A)

    out = jax.block_until_ready(forward(x, w_slab, b_slab))
    ref = jax.block_until_ready(reference_forward(x, params, A))

    assert out.shape == (B, D), f"bad output shape {out.shape}"
    np.testing.assert_allclose(np.asarray(out), np.asarray(ref),
                               rtol=2e-2, atol=2e-2)

    print("KERNEL_OK")
</pallas_src>

<mosaic_0001>
module attributes {stable_mosaic.version = 11 : i64} {
  func.func @kernel(%arg0: memref<16x8xf32, #tpu.memory_space<vmem>>, %arg1: memref<240x192xbf16, #tpu.memory_space<vmem>>, %arg2: memref<4x192xf32, #tpu.memory_space<vmem>>, %arg3: memref<2x8xf32, #tpu.memory_space<vmem>>) attributes {dimension_semantics = [], scalar_prefetch = 0 : i64, scratch_operands = 0 : i64, tpu.core_type = #tpu.core_type<tc>} {
    %c0 = arith.constant 0 : index
    %c0_0 = arith.constant 0 : index
    %0 = vector.load %arg1[%c0, %c0_0] : memref<240x192xbf16, #tpu.memory_space<vmem>>, vector<8x128xbf16>
    %c16 = arith.constant 16 : index
    %c0_1 = arith.constant 0 : index
    %1 = vector.load %arg1[%c16, %c0_1] : memref<240x192xbf16, #tpu.memory_space<vmem>>, vector<32x128xbf16>
    %c48 = arith.constant 48 : index
    %c0_2 = arith.constant 0 : index
    %2 = vector.load %arg1[%c48, %c0_2] : memref<240x192xbf16, #tpu.memory_space<vmem>>, vector<32x128xbf16>
    %c48_3 = arith.constant 48 : index
    %c0_4 = arith.constant 0 : index
    %3 = vector.load %arg1[%c48_3, %c0_4] : memref<240x192xbf16, #tpu.memory_space<vmem>>, vector<64x128xbf16>
    %c112 = arith.constant 112 : index
    %c0_5 = arith.constant 0 : index
    %4 = vector.load %arg1[%c112, %c0_5] : memref<240x192xbf16, #tpu.memory_space<vmem>>, vector<32x192xbf16>
    %c144 = arith.constant 144 : index
    %c0_6 = arith.constant 0 : index
    %5 = vector.load %arg1[%c144, %c0_6] : memref<240x192xbf16, #tpu.memory_space<vmem>>, vector<96x8xbf16>
    %c0_7 = arith.constant 0 : index
    %c0_8 = arith.constant 0 : index
    %6 = vector.load %arg2[%c0_7, %c0_8] : memref<4x192xf32, #tpu.memory_space<vmem>>, vector<1x128xf32>
    %c1 = arith.constant 1 : index
    %c0_9 = arith.constant 0 : index
    %7 = vector.load %arg2[%c1, %c0_9] : memref<4x192xf32, #tpu.memory_space<vmem>>, vector<1x128xf32>
    %c2 = arith.constant 2 : index
    %c0_10 = arith.constant 0 : index
    %8 = vector.load %arg2[%c2, %c0_10] : memref<4x192xf32, #tpu.memory_space<vmem>>, vector<1x192xf32>
    %c3 = arith.constant 3 : index
    %c0_11 = arith.constant 0 : index
    %9 = vector.load %arg2[%c3, %c0_11] : memref<4x192xf32, #tpu.memory_space<vmem>>, vector<1x8xf32>
    %10 = vector.shape_cast %7 : vector<1x128xf32> to vector<1x128xf32>
    %11 = vector.broadcast %10 : vector<1x128xf32> to vector<2x128xf32>
    %c0_12 = arith.constant 0 : index
    %c0_13 = arith.constant 0 : index
    %12 = vector.load %arg0[%c0_12, %c0_13] : memref<16x8xf32, #tpu.memory_space<vmem>>, vector<16x8xf32>
    %13 = arith.truncf %12 : vector<16x8xf32> to vector<16x8xbf16>
    %cst = arith.constant dense<0.000000e+00> : vector<16x128xf32>
    %14 = tpu.matmul %13, %0, %cst {dimension_numbers = #tpu.dot_dimension_numbers<[1], [0], [0], [1], [0, 0, 1, 1], [], []>} : vector<16x8xbf16>, vector<8x128xbf16>, vector<16x128xf32> -> vector<16x128xf32>
    %15 = vector.broadcast %6 : vector<1x128xf32> to vector<16x128xf32>
    %16 = arith.addf %14, %15 : vector<16x128xf32>
    %17 = vector.shape_cast %16 : vector<16x128xf32> to vector<2x8x128xf32>
    %18 = vector.extract_strided_slice %17 {offsets = [0, 0, 0], sizes = [2, 1, 128], strides = [1, 1, 1]} : vector<2x8x128xf32> to vector<2x1x128xf32>
    %19 = vector.shape_cast %18 : vector<2x1x128xf32> to vector<2x128xf32>
    %20 = vector.extract_strided_slice %17 {offsets = [0, 1, 0], sizes = [2, 1, 128], strides = [1, 1, 1]} : vector<2x8x128xf32> to vector<2x1x128xf32>
    %21 = vector.shape_cast %20 : vector<2x1x128xf32> to vector<2x128xf32>
    %22 = vector.extract_strided_slice %17 {offsets = [0, 2, 0], sizes = [2, 1, 128], strides = [1, 1, 1]} : vector<2x8x128xf32> to vector<2x1x128xf32>
    %23 = vector.shape_cast %22 : vector<2x1x128xf32> to vector<2x128xf32>
    %24 = vector.extract_strided_slice %17 {offsets = [0, 3, 0], sizes = [2, 1, 128], strides = [1, 1, 1]} : vector<2x8x128xf32> to vector<2x1x128xf32>
    %25 = vector.shape_cast %24 : vector<2x1x128xf32> to vector<2x128xf32>
    %26 = vector.extract_strided_slice %17 {offsets = [0, 4, 0], sizes = [2, 1, 128], strides = [1, 1, 1]} : vector<2x8x128xf32> to vector<2x1x128xf32>
    %27 = vector.shape_cast %26 : vector<2x1x128xf32> to vector<2x128xf32>
    %28 = vector.extract_strided_slice %17 {offsets = [0, 5, 0], sizes = [2, 1, 128], strides = [1, 1, 1]} : vector<2x8x128xf32> to vector<2x1x128xf32>
    %29 = vector.shape_cast %28 : vector<2x1x128xf32> to vector<2x128xf32>
    %30 = vector.extract_strided_slice %17 {offsets = [0, 6, 0], sizes = [2, 1, 128], strides = [1, 1, 1]} : vector<2x8x128xf32> to vector<2x1x128xf32>
    %31 = vector.shape_cast %30 : vector<2x1x128xf32> to vector<2x128xf32>
    %32 = vector.extract_strided_slice %17 {offsets = [0, 7, 0], sizes = [2, 1, 128], strides = [1, 1, 1]} : vector<2x8x128xf32> to vector<2x1x128xf32>
    %33 = vector.shape_cast %32 : vector<2x1x128xf32> to vector<2x128xf32>
    %cst_14 = arith.constant 0.000000e+00 : f32
    %34 = vector.broadcast %cst_14 : f32 to vector<2x32xf32>
    %cst_15 = arith.constant 0.000000e+00 : f32
    %35 = vector.broadcast %cst_15 : f32 to vector<2x32xf32>
    %36 = arith.negf %19 : vector<2x128xf32>
    %37 = math.exp %36 : vector<2x128xf32>
    %cst_16 = arith.constant 1.000000e+00 : f32
    %38 = vector.broadcast %cst_16 : f32 to vector<2x128xf32>
    %39 = arith.addf %38, %37 : vector<2x128xf32>
    %40 = arith.divf %38, %39 : vector<2x128xf32>
    %41 = math.tanh %19 : vector<2x128xf32>
    %42 = vector.extract_strided_slice %40 {offsets = [0, 0], sizes = [2, 32], strides = [1, 1]} : vector<2x128xf32> to vector<2x32xf32>
    %43 = vector.extract_strided_slice %40 {offsets = [0, 32], sizes = [2, 32], strides = [1, 1]} : vector<2x128xf32> to vector<2x32xf32>
    %44 = vector.extract_strided_slice %41 {offsets = [0, 64], sizes = [2, 32], strides = [1, 1]} : vector<2x128xf32> to vector<2x32xf32>
    %45 = vector.extract_strided_slice %40 {offsets = [0, 96], sizes = [2, 32], strides = [1, 1]} : vector<2x128xf32> to vector<2x32xf32>
    %46 = arith.mulf %43, %34 : vector<2x32xf32>
    %47 = arith.mulf %42, %44 : vector<2x32xf32>
    %48 = arith.addf %46, %47 : vector<2x32xf32>
    %49 = math.tanh %48 : vector<2x32xf32>
    %50 = arith.mulf %45, %49 : vector<2x32xf32>
    %51 = arith.truncf %50 : vector<2x32xf32> to vector<2x32xbf16>
    %cst_17 = arith.constant dense<0.000000e+00> : vector<2x128xf32>
    %52 = tpu.matmul %51, %2, %cst_17 {dimension_numbers = #tpu.dot_dimension_numbers<[1], [0], [0], [1], [0, 0, 1, 1], [], []>} : vector<2x32xbf16>, vector<32x128xbf16>, vector<2x128xf32> -> vector<2x128xf32>
    %53 = arith.addf %52, %11 : vector<2x128xf32>
    %54 = arith.negf %53 : vector<2x128xf32>
    %55 = math.exp %54 : vector<2x128xf32>
    %cst_18 = arith.constant 1.000000e+00 : f32
    %56 = vector.broadcast %cst_18 : f32 to vector<2x128xf32>
    %57 = arith.addf %56, %55 : vector<2x128xf32>
    %58 = arith.divf %56, %57 : vector<2x128xf32>
    %59 = math.tanh %53 : vector<2x128xf32>
    %60 = vector.extract_strided_slice %58 {offsets = [0, 0], sizes = [2, 32], strides = [1, 1]} : vector<2x128xf32> to vector<2x32xf32>
    %61 = vector.extract_strided_slice %58 {offsets = [0, 32], sizes = [2, 32], strides = [1, 1]} : vector<2x128xf32> to vector<2x32xf32>
    %62 = vector.extract_strided_slice %59 {offsets = [0, 64], sizes = [2, 32], strides = [1, 1]} : vector<2x128xf32> to vector<2x32xf32>
    %63 = vector.extract_strided_slice %58 {offsets = [0, 96], sizes = [2, 32], strides = [1, 1]} : vector<2x128xf32> to vector<2x32xf32>
    %64 = arith.mulf %61, %35 : vector<2x32xf32>
    %65 = arith.mulf %60, %62 : vector<2x32xf32>
    %66 = arith.addf %64, %65 : vector<2x32xf32>
    %67 = math.tanh %66 : vector<2x32xf32>
    %68 = arith.mulf %63, %67 : vector<2x32xf32>
    %69 = arith.truncf %50 : vector<2x32xf32> to vector<2x32xbf16>
    %cst_19 = arith.constant dense<0.000000e+00> : vector<2x128xf32>
    %70 = tpu.matmul %69, %1, %cst_19 {dimension_numbers = #tpu.dot_dimension_numbers<[1], [0], [0], [1], [0, 0, 1, 1], [], []>} : vector<2x32xbf16>, vector<32x128xbf16>, vector<2x128xf32> -> vector<2x128xf32>
    %71 = arith.addf %21, %70 : vector<2x128xf32>
    %72 = arith.negf %71 : vector<2x128xf32>
    %73 = math.exp %72 : vector<2x128xf32>
    %cst_20 = arith.constant 1.000000e+00 : f32
    %74 = vector.broadcast %cst_20 : f32 to vector<2x128xf32>
    %75 = arith.addf %74, %73 : vector<2x128xf32>
    %76 = arith.divf %74, %75 : vector<2x128xf32>
    %77 = math.tanh %71 : vector<2x128xf32>
    %78 = vector.extract_strided_slice %76 {offsets = [0, 0], sizes = [2, 32], strides = [1, 1]} : vector<2x128xf32> to vector<2x32xf32>
    %79 = vector.extract_strided_slice %76 {offsets = [0, 32], sizes = [2, 32], strides = [1, 1]} : vector<2x128xf32> to vector<2x32xf32>
    %80 = vector.extract_strided_slice %77 {offsets = [0, 64], sizes = [2, 32], strides = [1, 1]} : vector<2x128xf32> to vector<2x32xf32>
    %81 = vector.extract_strided_slice %76 {offsets = [0, 96], sizes = [2, 32], strides = [1, 1]} : vector<2x128xf32> to vector<2x32xf32>
    %82 = arith.mulf %79, %48 : vector<2x32xf32>
    %83 = arith.mulf %78, %80 : vector<2x32xf32>
    %84 = arith.addf %82, %83 : vector<2x32xf32>
    %85 = math.tanh %84 : vector<2x32xf32>
    %86 = arith.mulf %81, %85 : vector<2x32xf32>
    %87 = tpu.concatenate %86, %68 in 1 : vector<2x32xf32>, vector<2x32xf32> -> vector<2x64xf32>
    %88 = arith.truncf %87 : vector<2x64xf32> to vector<2x64xbf16>
    %cst_21 = arith.constant dense<0.000000e+00> : vector<2x128xf32>
    %89 = tpu.matmul %88, %3, %cst_21 {dimension_numbers = #tpu.dot_dimension_numbers<[1], [0], [0], [1], [0, 0, 1, 1], [], []>} : vector<2x64xbf16>, vector<64x128xbf16>, vector<2x128xf32> -> vector<2x128xf32>
    %90 = arith.addf %89, %11 : vector<2x128xf32>
    %91 = arith.negf %90 : vector<2x128xf32>
    %92 = math.exp %91 : vector<2x128xf32>
    %cst_22 = arith.constant 1.000000e+00 : f32
    %93 = vector.broadcast %cst_22 : f32 to vector<2x128xf32>
    %94 = arith.addf %93, %92 : vector<2x128xf32>
    %95 = arith.divf %93, %94 : vector<2x128xf32>
    %96 = math.tanh %90 : vector<2x128xf32>
    %97 = vector.extract_strided_slice %95 {offsets = [0, 0], sizes = [2, 32], strides = [1, 1]} : vector<2x128xf32> to vector<2x32xf32>
    %98 = vector.extract_strided_slice %95 {offsets = [0, 32], sizes = [2, 32], strides = [1, 1]} : vector<2x128xf32> to vector<2x32xf32>
    %99 = vector.extract_strided_slice %96 {offsets = [0, 64], sizes = [2, 32], strides = [1, 1]} : vector<2x128xf32> to vector<2x32xf32>
    %100 = vector.extract_strided_slice %95 {offsets = [0, 96], sizes = [2, 32], strides = [1, 1]} : vector<2x128xf32> to vector<2x32xf32>
    %101 = arith.mulf %98, %66 : vector<2x32xf32>
    %102 = arith.mulf %97, %99 : vector<2x32xf32>
    %103 = arith.addf %101, %102 : vector<2x32xf32>
    %104 = math.tanh %103 : vector<2x32xf32>
    %105 = arith.mulf %100, %104 : vector<2x32xf32>
    %106 = arith.truncf %86 : vector<2x32xf32> to vector<2x32xbf16>
    %cst_23 = arith.constant dense<0.000000e+00> : vector<2x128xf32>
    %107 = tpu.matmul %106, %1, %cst_23 {dimension_numbers = #tpu.dot_dimension_numbers<[1], [0], [0], [1], [0, 0, 1, 1], [], []>} : vector<2x32xbf16>, vector<32x128xbf16>, vector<2x128xf32> -> vector<2x128xf32>
    %108 = arith.addf %23, %107 : vector<2x128xf32>
    %109 = arith.negf %108 : vector<2x128xf32>
    %110 = math.exp %109 : vector<2x128xf32>
    %cst_24 = arith.constant 1.000000e+00 : f32
    %111 = vector.broadcast %cst_24 : f32 to vector<2x128xf32>
    %112 = arith.addf %111, %110 : vector<2x128xf32>
    %113 = arith.divf %111, %112 : vector<2x128xf32>
    %114 = math.tanh %108 : vector<2x128xf32>
    %115 = vector.extract_strided_slice %113 {offsets = [0, 0], sizes = [2, 32], strides = [1, 1]} : vector<2x128xf32> to vector<2x32xf32>
    %116 = vector.extract_strided_slice %113 {offsets = [0, 32], sizes = [2, 32], strides = [1, 1]} : vector<2x128xf32> to vector<2x32xf32>
    %117 = vector.extract_strided_slice %114 {offsets = [0, 64], sizes = [2, 32], strides = [1, 1]} : vector<2x128xf32> to vector<2x32xf32>
    %118 = vector.extract_strided_slice %113 {offsets = [0, 96], sizes = [2, 32], strides = [1, 1]} : vector<2x128xf32> to vector<2x32xf32>
    %119 = arith.mulf %116, %84 : vector<2x32xf32>
    %120 = arith.mulf %115, %117 : vector<2x32xf32>
    %121 = arith.addf %119, %120 : vector<2x32xf32>
    %122 = math.tanh %121 : vector<2x32xf32>
    %123 = arith.mulf %118, %122 : vector<2x32xf32>
    %124 = tpu.concatenate %123, %105 in 1 : vector<2x32xf32>, vector<2x32xf32> -> vector<2x64xf32>
    %125 = arith.truncf %124 : vector<2x64xf32> to vector<2x64xbf16>
    %cst_25 = arith.constant dense<0.000000e+00> : vector<2x128xf32>
    %126 = tpu.matmul %125, %3, %cst_25 {dimension_numbers = #tpu.dot_dimension_numbers<[1], [0], [0], [1], [0, 0, 1, 1], [], []>} : vector<2x64xbf16>, vector<64x128xbf16>, vector<2x128xf32> -> vector<2x128xf32>
    %127 = arith.addf %126, %11 : vector<2x128xf32>
    %128 = arith.negf %127 : vector<2x128xf32>
    %129 = math.exp %128 : vector<2x128xf32>
    %cst_26 = arith.constant 1.000000e+00 : f32
    %130 = vector.broadcast %cst_26 : f32 to vector<2x128xf32>
    %131 = arith.addf %130, %129 : vector<2x128xf32>
    %132 = arith.divf %130, %131 : vector<2x128xf32>
    %133 = math.tanh %127 : vector<2x128xf32>
    %134 = vector.extract_strided_slice %132 {offsets = [0, 0], sizes = [2, 32], strides = [1, 1]} : vector<2x128xf32> to vector<2x32xf32>
    %135 = vector.extract_strided_slice %132 {offsets = [0, 32], sizes = [2, 32], strides = [1, 1]} : vector<2x128xf32> to vector<2x32xf32>
    %136 = vector.extract_strided_slice %133 {offsets = [0, 64], sizes = [2, 32], strides = [1, 1]} : vector<2x128xf32> to vector<2x32xf32>
    %137 = vector.extract_strided_slice %132 {offsets = [0, 96], sizes = [2, 32], strides = [1, 1]} : vector<2x128xf32> to vector<2x32xf32>
    %138 = arith.mulf %135, %103 : vector<2x32xf32>
    %139 = arith.mulf %134, %136 : vector<2x32xf32>
    %140 = arith.addf %138, %139 : vector<2x32xf32>
    %141 = math.tanh %140 : vector<2x32xf32>
    %142 = arith.mulf %137, %141 : vector<2x32xf32>
    %143 = arith.truncf %123 : vector<2x32xf32> to vector<2x32xbf16>
    %cst_27 = arith.constant dense<0.000000e+00> : vector<2x128xf32>
    %144 = tpu.matmul %143, %1, %cst_27 {dimension_numbers = #tpu.dot_dimension_numbers<[1], [0], [0], [1], [0, 0, 1, 1], [], []>} : vector<2x32xbf16>, vector<32x128xbf16>, vector<2x128xf32> -> vector<2x128xf32>
    %145 = arith.addf %25, %144 : vector<2x128xf32>
    %146 = arith.negf %145 : vector<2x128xf32>
    %147 = math.exp %146 : vector<2x128xf32>
    %cst_28 = arith.constant 1.000000e+00 : f32
    %148 = vector.broadcast %cst_28 : f32 to vector<2x128xf32>
    %149 = arith.addf %148, %147 : vector<2x128xf32>
    %150 = arith.divf %148, %149 : vector<2x128xf32>
    %151 = math.tanh %145 : vector<2x128xf32>
    %152 = vector.extract_strided_slice %150 {offsets = [0, 0], sizes = [2, 32], strides = [1, 1]} : vector<2x128xf32> to vector<2x32xf32>
    %153 = vector.extract_strided_slice %150 {offsets = [0, 32], sizes = [2, 32], strides = [1, 1]} : vector<2x128xf32> to vector<2x32xf32>
    %154 = vector.extract_strided_slice %151 {offsets = [0, 64], sizes = [2, 32], strides = [1, 1]} : vector<2x128xf32> to vector<2x32xf32>
    %155 = vector.extract_strided_slice %150 {offsets = [0, 96], sizes = [2, 32], strides = [1, 1]} : vector<2x128xf32> to vector<2x32xf32>
    %156 = arith.mulf %153, %121 : vector<2x32xf32>
    %157 = arith.mulf %152, %154 : vector<2x32xf32>
    %158 = arith.addf %156, %157 : vector<2x32xf32>
    %159 = math.tanh %158 : vector<2x32xf32>
    %160 = arith.mulf %155, %159 : vector<2x32xf32>
    %161 = tpu.concatenate %160, %142 in 1 : vector<2x32xf32>, vector<2x32xf32> -> vector<2x64xf32>
    %162 = arith.truncf %161 : vector<2x64xf32> to vector<2x64xbf16>
    %cst_29 = arith.constant dense<0.000000e+00> : vector<2x128xf32>
    %163 = tpu.matmul %162, %3, %cst_29 {dimension_numbers = #tpu.dot_dimension_numbers<[1], [0], [0], [1], [0, 0, 1, 1], [], []>} : vector<2x64xbf16>, vector<64x128xbf16>, vector<2x128xf32> -> vector<2x128xf32>
    %164 = arith.addf %163, %11 : vector<2x128xf32>
    %165 = arith.negf %164 : vector<2x128xf32>
    %166 = math.exp %165 : vector<2x128xf32>
    %cst_30 = arith.constant 1.000000e+00 : f32
    %167 = vector.broadcast %cst_30 : f32 to vector<2x128xf32>
    %168 = arith.addf %167, %166 : vector<2x128xf32>
    %169 = arith.divf %167, %168 : vector<2x128xf32>
    %170 = math.tanh %164 : vector<2x128xf32>
    %171 = vector.extract_strided_slice %169 {offsets = [0, 0], sizes = [2, 32], strides = [1, 1]} : vector<2x128xf32> to vector<2x32xf32>
    %172 = vector.extract_strided_slice %169 {offsets = [0, 32], sizes = [2, 32], strides = [1, 1]} : vector<2x128xf32> to vector<2x32xf32>
    %173 = vector.extract_strided_slice %170 {offsets = [0, 64], sizes = [2, 32], strides = [1, 1]} : vector<2x128xf32> to vector<2x32xf32>
    %174 = vector.extract_strided_slice %169 {offsets = [0, 96], sizes = [2, 32], strides = [1, 1]} : vector<2x128xf32> to vector<2x32xf32>
    %175 = arith.mulf %172, %140 : vector<2x32xf32>
    %176 = arith.mulf %171, %173 : vector<2x32xf32>
    %177 = arith.addf %175, %176 : vector<2x32xf32>
    %178 = math.tanh %177 : vector<2x32xf32>
    %179 = arith.mulf %174, %178 : vector<2x32xf32>
    %180 = arith.truncf %160 : vector<2x32xf32> to vector<2x32xbf16>
    %cst_31 = arith.constant dense<0.000000e+00> : vector<2x128xf32>
    %181 = tpu.matmul %180, %1, %cst_31 {dimension_numbers = #tpu.dot_dimension_numbers<[1], [0], [0], [1], [0, 0, 1, 1], [], []>} : vector<2x32xbf16>, vector<32x128xbf16>, vector<2x128xf32> -> vector<2x128xf32>
    %182 = arith.addf %27, %181 : vector<2x128xf32>
    %183 = arith.negf %182 : vector<2x128xf32>
    %184 = math.exp %183 : vector<2x128xf32>
    %cst_32 = arith.constant 1.000000e+00 : f32
    %185 = vector.broadcast %cst_32 : f32 to vector<2x128xf32>
    %186 = arith.addf %185, %184 : vector<2x128xf32>
    %187 = arith.divf %185, %186 : vector<2x128xf32>
    %188 = math.tanh %182 : vector<2x128xf32>
    %189 = vector.extract_strided_slice %187 {offsets = [0, 0], sizes = [2, 32], strides = [1, 1]} : vector<2x128xf32> to vector<2x32xf32>
    %190 = vector.extract_strided_slice %187 {offsets = [0, 32], sizes = [2, 32], strides = [1, 1]} : vector<2x128xf32> to vector<2x32xf32>
    %191 = vector.extract_strided_slice %188 {offsets = [0, 64], sizes = [2, 32], strides = [1, 1]} : vector<2x128xf32> to vector<2x32xf32>
    %192 = vector.extract_strided_slice %187 {offsets = [0, 96], sizes = [2, 32], strides = [1, 1]} : vector<2x128xf32> to vector<2x32xf32>
    %193 = arith.mulf %190, %158 : vector<2x32xf32>
    %194 = arith.mulf %189, %191 : vector<2x32xf32>
    %195 = arith.addf %193, %194 : vector<2x32xf32>
    %196 = math.tanh %195 : vector<2x32xf32>
    %197 = arith.mulf %192, %196 : vector<2x32xf32>
    %198 = tpu.concatenate %197, %179 in 1 : vector<2x32xf32>, vector<2x32xf32> -> vector<2x64xf32>
    %199 = arith.truncf %198 : vector<2x64xf32> to vector<2x64xbf16>
    %cst_33 = arith.constant dense<0.000000e+00> : vector<2x128xf32>
    %200 = tpu.matmul %199, %3, %cst_33 {dimension_numbers = #tpu.dot_dimension_numbers<[1], [0], [0], [1], [0, 0, 1, 1], [], []>} : vector<2x64xbf16>, vector<64x128xbf16>, vector<2x128xf32> -> vector<2x128xf32>
    %201 = arith.addf %200, %11 : vector<2x128xf32>
    %202 = arith.negf %201 : vector<2x128xf32>
    %203 = math.exp %202 : vector<2x128xf32>
    %cst_34 = arith.constant 1.000000e+00 : f32
    %204 = vector.broadcast %cst_34 : f32 to vector<2x128xf32>
    %205 = arith.addf %204, %203 : vector<2x128xf32>
    %206 = arith.divf %204, %205 : vector<2x128xf32>
    %207 = math.tanh %201 : vector<2x128xf32>
    %208 = vector.extract_strided_slice %206 {offsets = [0, 0], sizes = [2, 32], strides = [1, 1]} : vector<2x128xf32> to vector<2x32xf32>
    %209 = vector.extract_strided_slice %206 {offsets = [0, 32], sizes = [2, 32], strides = [1, 1]} : vector<2x128xf32> to vector<2x32xf32>
    %210 = vector.extract_strided_slice %207 {offsets = [0, 64], sizes = [2, 32], strides = [1, 1]} : vector<2x128xf32> to vector<2x32xf32>
    %211 = vector.extract_strided_slice %206 {offsets = [0, 96], sizes = [2, 32], strides = [1, 1]} : vector<2x128xf32> to vector<2x32xf32>
    %212 = arith.mulf %209, %177 : vector<2x32xf32>
    %213 = arith.mulf %208, %210 : vector<2x32xf32>
    %214 = arith.addf %212, %213 : vector<2x32xf32>
    %215 = math.tanh %214 : vector<2x32xf32>
    %216 = arith.mulf %211, %215 : vector<2x32xf32>
    %217 = arith.truncf %197 : vector<2x32xf32> to vector<2x32xbf16>
    %cst_35 = arith.constant dense<0.000000e+00> : vector<2x128xf32>
    %218 = tpu.matmul %217, %1, %cst_35 {dimension_numbers = #tpu.dot_dimension_numbers<[1], [0], [0], [1], [0, 0, 1, 1], [], []>} : vector<2x32xbf16>, vector<32x128xbf16>, vector<2x128xf32> -> vector<2x128xf32>
    %219 = arith.addf %29, %218 : vector<2x128xf32>
    %220 = arith.negf %219 : vector<2x128xf32>
    %221 = math.exp %220 : vector<2x128xf32>
    %cst_36 = arith.constant 1.000000e+00 : f32
    %222 = vector.broadcast %cst_36 : f32 to vector<2x128xf32>
    %223 = arith.addf %222, %221 : vector<2x128xf32>
    %224 = arith.divf %222, %223 : vector<2x128xf32>
    %225 = math.tanh %219 : vector<2x128xf32>
    %226 = vector.extract_strided_slice %224 {offsets = [0, 0], sizes = [2, 32], strides = [1, 1]} : vector<2x128xf32> to vector<2x32xf32>
    %227 = vector.extract_strided_slice %224 {offsets = [0, 32], sizes = [2, 32], strides = [1, 1]} : vector<2x128xf32> to vector<2x32xf32>
    %228 = vector.extract_strided_slice %225 {offsets = [0, 64], sizes = [2, 32], strides = [1, 1]} : vector<2x128xf32> to vector<2x32xf32>
    %229 = vector.extract_strided_slice %224 {offsets = [0, 96], sizes = [2, 32], strides = [1, 1]} : vector<2x128xf32> to vector<2x32xf32>
    %230 = arith.mulf %227, %195 : vector<2x32xf32>
    %231 = arith.mulf %226, %228 : vector<2x32xf32>
    %232 = arith.addf %230, %231 : vector<2x32xf32>
    %233 = math.tanh %232 : vector<2x32xf32>
    %234 = arith.mulf %229, %233 : vector<2x32xf32>
    %235 = tpu.concatenate %234, %216 in 1 : vector<2x32xf32>, vector<2x32xf32> -> vector<2x64xf32>
    %236 = arith.truncf %235 : vector<2x64xf32> to vector<2x64xbf16>
    %cst_37 = arith.constant dense<0.000000e+00> : vector<2x128xf32>
    %237 = tpu.matmul %236, %3, %cst_37 {dimension_numbers = #tpu.dot_dimension_numbers<[1], [0], [0], [1], [0, 0, 1, 1], [], []>} : vector<2x64xbf16>, vector<64x128xbf16>, vector<2x128xf32> -> vector<2x128xf32>
    %238 = arith.addf %237, %11 : vector<2x128xf32>
    %239 = arith.negf %238 : vector<2x128xf32>
    %240 = math.exp %239 : vector<2x128xf32>
    %cst_38 = arith.constant 1.000000e+00 : f32
    %241 = vector.broadcast %cst_38 : f32 to vector<2x128xf32>
    %242 = arith.addf %241, %240 : vector<2x128xf32>
    %243 = arith.divf %241, %242 : vector<2x128xf32>
    %244 = math.tanh %238 : vector<2x128xf32>
    %245 = vector.extract_strided_slice %243 {offsets = [0, 0], sizes = [2, 32], strides = [1, 1]} : vector<2x128xf32> to vector<2x32xf32>
    %246 = vector.extract_strided_slice %243 {offsets = [0, 32], sizes = [2, 32], strides = [1, 1]} : vector<2x128xf32> to vector<2x32xf32>
    %247 = vector.extract_strided_slice %244 {offsets = [0, 64], sizes = [2, 32], strides = [1, 1]} : vector<2x128xf32> to vector<2x32xf32>
    %248 = vector.extract_strided_slice %243 {offsets = [0, 96], sizes = [2, 32], strides = [1, 1]} : vector<2x128xf32> to vector<2x32xf32>
    %249 = arith.mulf %246, %214 : vector<2x32xf32>
    %250 = arith.mulf %245, %247 : vector<2x32xf32>
    %251 = arith.addf %249, %250 : vector<2x32xf32>
    %252 = math.tanh %251 : vector<2x32xf32>
    %253 = arith.mulf %248, %252 : vector<2x32xf32>
    %254 = arith.truncf %234 : vector<2x32xf32> to vector<2x32xbf16>
    %cst_39 = arith.constant dense<0.000000e+00> : vector<2x128xf32>
    %255 = tpu.matmul %254, %1, %cst_39 {dimension_numbers = #tpu.dot_dimension_numbers<[1], [0], [0], [1], [0, 0, 1, 1], [], []>} : vector<2x32xbf16>, vector<32x128xbf16>, vector<2x128xf32> -> vector<2x128xf32>
    %256 = arith.addf %31, %255 : vector<2x128xf32>
    %257 = arith.negf %256 : vector<2x128xf32>
    %258 = math.exp %257 : vector<2x128xf32>
    %cst_40 = arith.constant 1.000000e+00 : f32
    %259 = vector.broadcast %cst_40 : f32 to vector<2x128xf32>
    %260 = arith.addf %259, %258 : vector<2x128xf32>
    %261 = arith.divf %259, %260 : vector<2x128xf32>
    %262 = math.tanh %256 : vector<2x128xf32>
    %263 = vector.extract_strided_slice %261 {offsets = [0, 0], sizes = [2, 32], strides = [1, 1]} : vector<2x128xf32> to vector<2x32xf32>
    %264 = vector.extract_strided_slice %261 {offsets = [0, 32], sizes = [2, 32], strides = [1, 1]} : vector<2x128xf32> to vector<2x32xf32>
    %265 = vector.extract_strided_slice %262 {offsets = [0, 64], sizes = [2, 32], strides = [1, 1]} : vector<2x128xf32> to vector<2x32xf32>
    %266 = vector.extract_strided_slice %261 {offsets = [0, 96], sizes = [2, 32], strides = [1, 1]} : vector<2x128xf32> to vector<2x32xf32>
    %267 = arith.mulf %264, %232 : vector<2x32xf32>
    %268 = arith.mulf %263, %265 : vector<2x32xf32>
    %269 = arith.addf %267, %268 : vector<2x32xf32>
    %270 = math.tanh %269 : vector<2x32xf32>
    %271 = arith.mulf %266, %270 : vector<2x32xf32>
    %272 = tpu.concatenate %271, %253 in 1 : vector<2x32xf32>, vector<2x32xf32> -> vector<2x64xf32>
    %273 = arith.truncf %272 : vector<2x64xf32> to vector<2x64xbf16>
    %cst_41 = arith.constant dense<0.000000e+00> : vector<2x128xf32>
    %274 = tpu.matmul %273, %3, %cst_41 {dimension_numbers = #tpu.dot_dimension_numbers<[1], [0], [0], [1], [0, 0, 1, 1], [], []>} : vector<2x64xbf16>, vector<64x128xbf16>, vector<2x128xf32> -> vector<2x128xf32>
    %275 = arith.addf %274, %11 : vector<2x128xf32>
    %276 = arith.negf %275 : vector<2x128xf32>
    %277 = math.exp %276 : vector<2x128xf32>
    %cst_42 = arith.constant 1.000000e+00 : f32
    %278 = vector.broadcast %cst_42 : f32 to vector<2x128xf32>
    %279 = arith.addf %278, %277 : vector<2x128xf32>
    %280 = arith.divf %278, %279 : vector<2x128xf32>
    %281 = math.tanh %275 : vector<2x128xf32>
    %282 = vector.extract_strided_slice %280 {offsets = [0, 0], sizes = [2, 32], strides = [1, 1]} : vector<2x128xf32> to vector<2x32xf32>
    %283 = vector.extract_strided_slice %280 {offsets = [0, 32], sizes = [2, 32], strides = [1, 1]} : vector<2x128xf32> to vector<2x32xf32>
    %284 = vector.extract_strided_slice %281 {offsets = [0, 64], sizes = [2, 32], strides = [1, 1]} : vector<2x128xf32> to vector<2x32xf32>
    %285 = vector.extract_strided_slice %280 {offsets = [0, 96], sizes = [2, 32], strides = [1, 1]} : vector<2x128xf32> to vector<2x32xf32>
    %286 = arith.mulf %283, %251 : vector<2x32xf32>
    %287 = arith.mulf %282, %284 : vector<2x32xf32>
    %288 = arith.addf %286, %287 : vector<2x32xf32>
    %289 = math.tanh %288 : vector<2x32xf32>
    %290 = arith.mulf %285, %289 : vector<2x32xf32>
    %291 = arith.truncf %271 : vector<2x32xf32> to vector<2x32xbf16>
    %cst_43 = arith.constant dense<0.000000e+00> : vector<2x128xf32>
    %292 = tpu.matmul %291, %1, %cst_43 {dimension_numbers = #tpu.dot_dimension_numbers<[1], [0], [0], [1], [0, 0, 1, 1], [], []>} : vector<2x32xbf16>, vector<32x128xbf16>, vector<2x128xf32> -> vector<2x128xf32>
    %293 = arith.addf %33, %292 : vector<2x128xf32>
    %294 = arith.negf %293 : vector<2x128xf32>
    %295 = math.exp %294 : vector<2x128xf32>
    %cst_44 = arith.constant 1.000000e+00 : f32
    %296 = vector.broadcast %cst_44 : f32 to vector<2x128xf32>
    %297 = arith.addf %296, %295 : vector<2x128xf32>
    %298 = arith.divf %296, %297 : vector<2x128xf32>
    %299 = math.tanh %293 : vector<2x128xf32>
    %300 = vector.extract_strided_slice %298 {offsets = [0, 0], sizes = [2, 32], strides = [1, 1]} : vector<2x128xf32> to vector<2x32xf32>
    %301 = vector.extract_strided_slice %298 {offsets = [0, 32], sizes = [2, 32], strides = [1, 1]} : vector<2x128xf32> to vector<2x32xf32>
    %302 = vector.extract_strided_slice %299 {offsets = [0, 64], sizes = [2, 32], strides = [1, 1]} : vector<2x128xf32> to vector<2x32xf32>
    %303 = vector.extract_strided_slice %298 {offsets = [0, 96], sizes = [2, 32], strides = [1, 1]} : vector<2x128xf32> to vector<2x32xf32>
    %304 = arith.mulf %301, %269 : vector<2x32xf32>
    %305 = arith.mulf %300, %302 : vector<2x32xf32>
    %306 = arith.addf %304, %305 : vector<2x32xf32>
    %307 = math.tanh %306 : vector<2x32xf32>
    %308 = arith.mulf %303, %307 : vector<2x32xf32>
    %309 = tpu.concatenate %308, %290 in 1 : vector<2x32xf32>, vector<2x32xf32> -> vector<2x64xf32>
    %310 = arith.truncf %309 : vector<2x64xf32> to vector<2x64xbf16>
    %cst_45 = arith.constant dense<0.000000e+00> : vector<2x128xf32>
    %311 = tpu.matmul %310, %3, %cst_45 {dimension_numbers = #tpu.dot_dimension_numbers<[1], [0], [0], [1], [0, 0, 1, 1], [], []>} : vector<2x64xbf16>, vector<64x128xbf16>, vector<2x128xf32> -> vector<2x128xf32>
    %312 = arith.addf %311, %11 : vector<2x128xf32>
    %313 = arith.negf %312 : vector<2x128xf32>
    %314 = math.exp %313 : vector<2x128xf32>
    %cst_46 = arith.constant 1.000000e+00 : f32
    %315 = vector.broadcast %cst_46 : f32 to vector<2x128xf32>
    %316 = arith.addf %315, %314 : vector<2x128xf32>
    %317 = arith.divf %315, %316 : vector<2x128xf32>
    %318 = math.tanh %312 : vector<2x128xf32>
    %319 = vector.extract_strided_slice %317 {offsets = [0, 0], sizes = [2, 32], strides = [1, 1]} : vector<2x128xf32> to vector<2x32xf32>
    %320 = vector.extract_strided_slice %317 {offsets = [0, 32], sizes = [2, 32], strides = [1, 1]} : vector<2x128xf32> to vector<2x32xf32>
    %321 = vector.extract_strided_slice %318 {offsets = [0, 64], sizes = [2, 32], strides = [1, 1]} : vector<2x128xf32> to vector<2x32xf32>
    %322 = vector.extract_strided_slice %317 {offsets = [0, 96], sizes = [2, 32], strides = [1, 1]} : vector<2x128xf32> to vector<2x32xf32>
    %323 = arith.mulf %320, %288 : vector<2x32xf32>
    %324 = arith.mulf %319, %321 : vector<2x32xf32>
    %325 = arith.addf %323, %324 : vector<2x32xf32>
    %326 = math.tanh %325 : vector<2x32xf32>
    %327 = arith.mulf %322, %326 : vector<2x32xf32>
    %328 = tpu.concatenate %68, %105, %142, %179, %216, %253, %290, %327 in 0 : vector<2x32xf32>, vector<2x32xf32>, vector<2x32xf32>, vector<2x32xf32>, vector<2x32xf32>, vector<2x32xf32>, vector<2x32xf32>, vector<2x32xf32> -> vector<16x32xf32>
    %329 = arith.truncf %328 : vector<16x32xf32> to vector<16x32xbf16>
    %cst_47 = arith.constant dense<0.000000e+00> : vector<16x192xf32>
    %330 = tpu.matmul %329, %4, %cst_47 {dimension_numbers = #tpu.dot_dimension_numbers<[1], [0], [0], [1], [0, 0, 1, 1], [], []>} : vector<16x32xbf16>, vector<32x192xbf16>, vector<16x192xf32> -> vector<16x192xf32>
    %331 = vector.broadcast %8 : vector<1x192xf32> to vector<16x192xf32>
    %332 = arith.addf %330, %331 : vector<16x192xf32>
    %333 = vector.extract_strided_slice %332 {offsets = [14, 0], sizes = [2, 64], strides = [1, 1]} : vector<16x192xf32> to vector<2x64xf32>
    %334 = vector.extract_strided_slice %332 {offsets = [0, 64], sizes = [16, 64], strides = [1, 1]} : vector<16x192xf32> to vector<16x64xf32>
    %335 = vector.extract_strided_slice %332 {offsets = [0, 128], sizes = [16, 64], strides = [1, 1]} : vector<16x192xf32> to vector<16x64xf32>
    %336 = vector.extract_strided_slice %334 {offsets = [0, 0], sizes = [2, 64], strides = [1, 1]} : vector<16x64xf32> to vector<2x64xf32>
    %337 = vector.extract_strided_slice %334 {offsets = [2, 0], sizes = [2, 64], strides = [1, 1]} : vector<16x64xf32> to vector<2x64xf32>
    %338 = vector.extract_strided_slice %334 {offsets = [4, 0], sizes = [2, 64], strides = [1, 1]} : vector<16x64xf32> to vector<2x64xf32>
    %339 = vector.extract_strided_slice %334 {offsets = [6, 0], sizes = [2, 64], strides = [1, 1]} : vector<16x64xf32> to vector<2x64xf32>
    %340 = vector.extract_strided_slice %334 {offsets = [8, 0], sizes = [2, 64], strides = [1, 1]} : vector<16x64xf32> to vector<2x64xf32>
    %341 = vector.extract_strided_slice %334 {offsets = [10, 0], sizes = [2, 64], strides = [1, 1]} : vector<16x64xf32> to vector<2x64xf32>
    %342 = vector.extract_strided_slice %334 {offsets = [12, 0], sizes = [2, 64], strides = [1, 1]} : vector<16x64xf32> to vector<2x64xf32>
    %343 = vector.extract_strided_slice %334 {offsets = [14, 0], sizes = [2, 64], strides = [1, 1]} : vector<16x64xf32> to vector<2x64xf32>
    %344 = vector.extract_strided_slice %335 {offsets = [0, 0], sizes = [2, 64], strides = [1, 1]} : vector<16x64xf32> to vector<2x64xf32>
    %345 = vector.extract_strided_slice %335 {offsets = [2, 0], sizes = [2, 64], strides = [1, 1]} : vector<16x64xf32> to vector<2x64xf32>
    %346 = vector.extract_strided_slice %335 {offsets = [4, 0], sizes = [2, 64], strides = [1, 1]} : vector<16x64xf32> to vector<2x64xf32>
    %347 = vector.extract_strided_slice %335 {offsets = [6, 0], sizes = [2, 64], strides = [1, 1]} : vector<16x64xf32> to vector<2x64xf32>
    %348 = vector.extract_strided_slice %335 {offsets = [8, 0], sizes = [2, 64], strides = [1, 1]} : vector<16x64xf32> to vector<2x64xf32>
    %349 = vector.extract_strided_slice %335 {offsets = [10, 0], sizes = [2, 64], strides = [1, 1]} : vector<16x64xf32> to vector<2x64xf32>
    %350 = vector.extract_strided_slice %335 {offsets = [12, 0], sizes = [2, 64], strides = [1, 1]} : vector<16x64xf32> to vector<2x64xf32>
    %351 = vector.extract_strided_slice %335 {offsets = [14, 0], sizes = [2, 64], strides = [1, 1]} : vector<16x64xf32> to vector<2x64xf32>
    %352 = arith.mulf %336, %333 : vector<2x64xf32>
    %cst_48 = arith.constant dense<0.000000e+00> : vector<2xf32>
    %353 = vector.multi_reduction <add>, %352, %cst_48 [1] : vector<2x64xf32> to vector<2xf32>
    %354 = vector.shape_cast %353 : vector<2xf32> to vector<2x1xf32>
    %cst_49 = arith.constant 1.250000e-01 : f32
    %355 = vector.broadcast %cst_49 : f32 to vector<2x1xf32>
    %356 = arith.mulf %354, %355 : vector<2x1xf32>
    %357 = arith.mulf %337, %333 : vector<2x64xf32>
    %cst_50 = arith.constant dense<0.000000e+00> : vector<2xf32>
    %358 = vector.multi_reduction <add>, %357, %cst_50 [1] : vector<2x64xf32> to vector<2xf32>
    %359 = vector.shape_cast %358 : vector<2xf32> to vector<2x1xf32>
    %cst_51 = arith.constant 1.250000e-01 : f32
    %360 = vector.broadcast %cst_51 : f32 to vector<2x1xf32>
    %361 = arith.mulf %359, %360 : vector<2x1xf32>
    %362 = arith.mulf %338, %333 : vector<2x64xf32>
    %cst_52 = arith.constant dense<0.000000e+00> : vector<2xf32>
    %363 = vector.multi_reduction <add>, %362, %cst_52 [1] : vector<2x64xf32> to vector<2xf32>
    %364 = vector.shape_cast %363 : vector<2xf32> to vector<2x1xf32>
    %cst_53 = arith.constant 1.250000e-01 : f32
    %365 = vector.broadcast %cst_53 : f32 to vector<2x1xf32>
    %366 = arith.mulf %364, %365 : vector<2x1xf32>
    %367 = arith.mulf %339, %333 : vector<2x64xf32>
    %cst_54 = arith.constant dense<0.000000e+00> : vector<2xf32>
    %368 = vector.multi_reduction <add>, %367, %cst_54 [1] : vector<2x64xf32> to vector<2xf32>
    %369 = vector.shape_cast %368 : vector<2xf32> to vector<2x1xf32>
    %cst_55 = arith.constant 1.250000e-01 : f32
    %370 = vector.broadcast %cst_55 : f32 to vector<2x1xf32>
    %371 = arith.mulf %369, %370 : vector<2x1xf32>
    %372 = arith.mulf %340, %333 : vector<2x64xf32>
    %cst_56 = arith.constant dense<0.000000e+00> : vector<2xf32>
    %373 = vector.multi_reduction <add>, %372, %cst_56 [1] : vector<2x64xf32> to vector<2xf32>
    %374 = vector.shape_cast %373 : vector<2xf32> to vector<2x1xf32>
    %cst_57 = arith.constant 1.250000e-01 : f32
    %375 = vector.broadcast %cst_57 : f32 to vector<2x1xf32>
    %376 = arith.mulf %374, %375 : vector<2x1xf32>
    %377 = arith.mulf %341, %333 : vector<2x64xf32>
    %cst_58 = arith.constant dense<0.000000e+00> : vector<2xf32>
    %378 = vector.multi_reduction <add>, %377, %cst_58 [1] : vector<2x64xf32> to vector<2xf32>
    %379 = vector.shape_cast %378 : vector<2xf32> to vector<2x1xf32>
    %cst_59 = arith.constant 1.250000e-01 : f32
    %380 = vector.broadcast %cst_59 : f32 to vector<2x1xf32>
    %381 = arith.mulf %379, %380 : vector<2x1xf32>
    %382 = arith.mulf %342, %333 : vector<2x64xf32>
    %cst_60 = arith.constant dense<0.000000e+00> : vector<2xf32>
    %383 = vector.multi_reduction <add>, %382, %cst_60 [1] : vector<2x64xf32> to vector<2xf32>
    %384 = vector.shape_cast %383 : vector<2xf32> to vector<2x1xf32>
    %cst_61 = arith.constant 1.250000e-01 : f32
    %385 = vector.broadcast %cst_61 : f32 to vector<2x1xf32>
    %386 = arith.mulf %384, %385 : vector<2x1xf32>
    %387 = arith.mulf %343, %333 : vector<2x64xf32>
    %cst_62 = arith.constant dense<0.000000e+00> : vector<2xf32>
    %388 = vector.multi_reduction <add>, %387, %cst_62 [1] : vector<2x64xf32> to vector<2xf32>
    %389 = vector.shape_cast %388 : vector<2xf32> to vector<2x1xf32>
    %cst_63 = arith.constant 1.250000e-01 : f32
    %390 = vector.broadcast %cst_63 : f32 to vector<2x1xf32>
    %391 = arith.mulf %389, %390 : vector<2x1xf32>
    %392 = arith.maximumf %356, %361 : vector<2x1xf32>
    %393 = arith.maximumf %392, %366 : vector<2x1xf32>
    %394 = arith.maximumf %393, %371 : vector<2x1xf32>
    %395 = arith.maximumf %394, %376 : vector<2x1xf32>
    %396 = arith.maximumf %395, %381 : vector<2x1xf32>
    %397 = arith.maximumf %396, %386 : vector<2x1xf32>
    %398 = arith.maximumf %397, %391 : vector<2x1xf32>
    %399 = arith.subf %356, %398 : vector<2x1xf32>
    %400 = math.exp %399 : vector<2x1xf32>
    %401 = arith.subf %361, %398 : vector<2x1xf32>
    %402 = math.exp %401 : vector<2x1xf32>
    %403 = arith.subf %366, %398 : vector<2x1xf32>
    %404 = math.exp %403 : vector<2x1xf32>
    %405 = arith.subf %371, %398 : vector<2x1xf32>
    %406 = math.exp %405 : vector<2x1xf32>
    %407 = arith.subf %376, %398 : vector<2x1xf32>
    %408 = math.exp %407 : vector<2x1xf32>
    %409 = arith.subf %381, %398 : vector<2x1xf32>
    %410 = math.exp %409 : vector<2x1xf32>
    %411 = arith.subf %386, %398 : vector<2x1xf32>
    %412 = math.exp %411 : vector<2x1xf32>
    %413 = arith.subf %391, %398 : vector<2x1xf32>
    %414 = math.exp %413 : vector<2x1xf32>
    %415 = vector.broadcast %400 : vector<2x1xf32> to vector<2x64xf32>
    %416 = arith.mulf %415, %344 : vector<2x64xf32>
    %417 = arith.addf %400, %402 : vector<2x1xf32>
    %418 = vector.broadcast %402 : vector<2x1xf32> to vector<2x64xf32>
    %419 = arith.mulf %418, %345 : vector<2x64xf32>
    %420 = arith.addf %416, %419 : vector<2x64xf32>
    %421 = arith.addf %417, %404 : vector<2x1xf32>
    %422 = vector.broadcast %404 : vector<2x1xf32> to vector<2x64xf32>
    %423 = arith.mulf %422, %346 : vector<2x64xf32>
    %424 = arith.addf %420, %423 : vector<2x64xf32>
    %425 = arith.addf %421, %406 : vector<2x1xf32>
    %426 = vector.broadcast %406 : vector<2x1xf32> to vector<2x64xf32>
    %427 = arith.mulf %426, %347 : vector<2x64xf32>
    %428 = arith.addf %424, %427 : vector<2x64xf32>
    %429 = arith.addf %425, %408 : vector<2x1xf32>
    %430 = vector.broadcast %408 : vector<2x1xf32> to vector<2x64xf32>
    %431 = arith.mulf %430, %348 : vector<2x64xf32>
    %432 = arith.addf %428, %431 : vector<2x64xf32>
    %433 = arith.addf %429, %410 : vector<2x1xf32>
    %434 = vector.broadcast %410 : vector<2x1xf32> to vector<2x64xf32>
    %435 = arith.mulf %434, %349 : vector<2x64xf32>
    %436 = arith.addf %432, %435 : vector<2x64xf32>
    %437 = arith.addf %433, %412 : vector<2x1xf32>
    %438 = vector.broadcast %412 : vector<2x1xf32> to vector<2x64xf32>
    %439 = arith.mulf %438, %350 : vector<2x64xf32>
    %440 = arith.addf %436, %439 : vector<2x64xf32>
    %441 = arith.addf %437, %414 : vector<2x1xf32>
    %442 = vector.broadcast %414 : vector<2x1xf32> to vector<2x64xf32>
    %443 = arith.mulf %442, %351 : vector<2x64xf32>
    %444 = arith.addf %440, %443 : vector<2x64xf32>
    %445 = tpu.reciprocal %441 {approx = true} : vector<2x1xf32> -> vector<2x1xf32>
    %446 = vector.broadcast %445 : vector<2x1xf32> to vector<2x64xf32>
    %447 = arith.mulf %444, %446 : vector<2x64xf32>
    %448 = tpu.concatenate %447, %327 in 1 : vector<2x64xf32>, vector<2x32xf32> -> vector<2x96xf32>
    %449 = arith.truncf %448 : vector<2x96xf32> to vector<2x96xbf16>
    %cst_64 = arith.constant dense<0.000000e+00> : vector<2x8xf32>
    %450 = tpu.matmul %449, %5, %cst_64 {dimension_numbers = #tpu.dot_dimension_numbers<[1], [0], [0], [1], [0, 0, 1, 1], [], []>} : vector<2x96xbf16>, vector<96x8xbf16>, vector<2x8xf32> -> vector<2x8xf32>
    %451 = vector.broadcast %9 : vector<1x8xf32> to vector<2x8xf32>
    %452 = arith.addf %450, %451 : vector<2x8xf32>
    %c0_65 = arith.constant 0 : index
    %c0_66 = arith.constant 0 : index
    %453 = vector.load %arg3[%c0_65, %c0_66] : memref<2x8xf32, #tpu.memory_space<vmem>>, vector<2x8xf32>
    tpu.vector_store %arg3[%c0_65, %c0_66], %452 {strides = array<i32>} : memref<2x8xf32, #tpu.memory_space<vmem>>, vector<2x8xf32>,
    return
  }
}

</mosaic_0001>

<llo_original>
// kernel: forward.1
$region0: #{forward.1}
  #allocation0 [shape = 'u32[]', space=smem, size = 0x4, offset = 0x4, fixed_abs, tag = 'smem constant byte address 0x4 - core index']
  #allocation1 [shape = 'u32[72,128]{1,0:T(1,128)}', space=vmem, size = 0x9000, scoped, tag = 'internal scratch']
  %s0 = inlined_call_operand.vmem [shape: f32[16,8], index: 0, kind: input, shape index: {}]
  %s1 = inlined_call_operand.vmem [shape: bf16[240,192], index: 1, kind: input, shape index: {}]
  %s2 = inlined_call_operand.vmem [shape: f32[4,192], index: 2, kind: input, shape index: {}]
  %s3 = inlined_call_operand.hbm [shape: f32[2,8], index: 3, kind: output, shape index: {}]
  %s4 = sld [smem:[#allocation0]]
  $region22: #{forward.1} parent=0
    _
  %s6 = ssub.s32 1, %s4
  %s7 = scalar_select 0, %s6, %s4
  $region1: #{forward.1} parent=0
    #allocation2 [shape = 'u8[1024]{0}', space=vmem, size = 0x400, scoped, tag = 'output window, operand 0, single buffered']
    #allocation3 [shape = 's32[1]{0}', space=sflag, size = 0x4, scoped, tag = 'scoped memory for forward.1']
    %8 = vsyncpa [#allocation3], 0
    // Predicated region
    $region2: #{forward.1} parent=1 // pred_check
      _
    $region3: #{forward.1} parent=1 // pred_check_branch
      %10 = sbr.rel (0) target = $region5
    $region4: #{forward.1} parent=1 // pred_region
      _
    $region5: #{forward.1} parent=1 // pred_fallthru
      _
    // Predicated region
    $region6: #{forward.1} parent=1 // pred_check
      _
    $region7: #{forward.1} parent=1 // pred_check_branch
      %12 = sbr.rel (0) target = $region9
    $region8: #{forward.1} parent=1 // pred_region
      _
    $region9: #{forward.1} parent=1 // pred_fallthru
      _
    // Predicated region
    $region10: #{forward.1} parent=1 // pred_check
      _
    $region11: #{forward.1} parent=1 // pred_check_branch
      %14 = sbr.rel (0) target = $region13
    $region12: #{forward.1} parent=1 // pred_region
      _
    $region13: #{forward.1} parent=1 // pred_fallthru
      _
    %v16 = vld [vmem:[%s1] sm:$0xf]
    %v17 = vld [vmem:[%s1 + $0x10] sm:$0xf]
    %v18 = vld [vmem:[%s1 + $0x18] sm:$0xf]
    %v19 = vld [vmem:[%s1 + $0x20] sm:$0xf]
    %v20 = vld [vmem:[%s1 + $0x28] sm:$0xf]
    %v21 = vld [vmem:[%s1 + $0x30] sm:$0xf]
    %v22 = vld [vmem:[%s1 + $0x38] sm:$0xf]
    %v23 = vld [vmem:[%s1 + $0x40] sm:$0xf]
    %v24 = vld [vmem:[%s1 + $0x48] sm:$0xf]
    %v25 = vld [vmem:[%s1 + $0x50] sm:$0xf]
    %v26 = vld [vmem:[%s1 + $0x58] sm:$0xf]
    %v27 = vld [vmem:[%s1 + $0x60] sm:$0xf]
    %v28 = vld [vmem:[%s1 + $0x68] sm:$0xf]
    %v29 = vld [vmem:[%s1 + $0x70] sm:$0xff]
    %v30 = vld [vmem:[%s1 + $0x78] sm:$0xff]
    %v31 = vld [vmem:[%s1 + $0x80] sm:$0xff]
    %v32 = vld [vmem:[%s1 + $0x88] sm:$0xff]
    %v33 = vld [vmem:[%s1 + $0x90] sm:$0xf]
    %v34 = vld [vmem:[%s1 + $0x98] sm:$0xf]
    %v35 = vld [vmem:[%s1 + $0xa0] sm:$0xf]
    %v36 = vld [vmem:[%s1 + $0xa8] sm:$0xf]
    %v37 = vld [vmem:[%s1 + $0xb0] sm:$0xf]
    %v38 = vld [vmem:[%s1 + $0xb8] sm:$0xf]
    %v39 = vld [vmem:[%s1 + $0xc0] sm:$0xf]
    %v40 = vld [vmem:[%s1 + $0xc8] sm:$0xf]
    %v41 = vld [vmem:[%s1 + $0xd0] sm:$0xf]
    %v42 = vld [vmem:[%s1 + $0xd8] sm:$0xf]
    %v43 = vld [vmem:[%s1 + $0xe0] sm:$0xf]
    %v44 = vld [vmem:[%s1 + $0xe8] sm:$0xf]
    %v45 = vld [vmem:[%s2] sm:$0x1]
    %v46 = vld [vmem:[%s2 + $0x1] sm:$0x1]
    %s47 = scalar_lea.vmem %s2, 2
    %v48 = vld [vmem:[%s47] ss:$4 sm:$0x3]
    %v49 = vld [vmem:[%s2 + $0x3] sm:$0x1]
    %v50 = vperm.slane %v46, 0
    %v51 = vld [vmem:[%s0] sm:$0xff]
    %v52 = vld [vmem:[%s0 + $0x8] sm:$0xff]
    %v53 = vpack.c.bf16 %v52, %v51
    %v54 = vperm.slane %v45, 0
    %vm55 = vcmask 64512
    %v57 = vsel %vm55, %v53, 0
    %vm59 = vcmask 1043456
    %v61 = vsel %vm59, %v16, 0
    %63 = vmatpush.bf16.msra.mxu0 0
    %64 = vmatpush.bf16.msra.mxu0 0
    %65 = vmatpush.bf16.msra.mxu0 0
    %66 = vmatpush.bf16.msra.mxu0 0
    %67 = vmatpush.bf16.msra.mxu0 0
    %68 = vmatpush.bf16.msra.mxu0 0
    %69 = vmatpush.bf16.msra.mxu0 0
    %70 = vmatpush.bf16.msra.mxu0 %v61
    %71 = vmatmul.bf16.gmra.mxu0 %v57
    %v72 = vpop.f32.mrf.mxu0
    %v73 = vadd.f32 %v54, %v72
    %v74 = vpop.f32.mrf.mxu0
    %v75 = vadd.f32 %v54, %v74
    %76 = vdwg.mxu0
    %v77 = vxor.u32 %v73, 2147483648
    %v78 = vxor.u32 %v75, 2147483648
    %v79 = vmul.f32 %v77, 1.442695
    %v80 = vpow.pop %v79
    %v81 = vmul.f32 %v78, 1.442695
    %v82 = vpow.pop %v81
    %v83 = vadd.f32 %v80, 1.0
    %v84 = vadd.f32 %v82, 1.0
    %v85 = vrcp.pop %v83
    %v86 = vmul.f32 %v83, %v85
    %v87 = vsub.f32 1.0, %v86
    %v88 = vmul.f32 %v85, %v87
    %v89 = vadd.f32 %v85, %v88
    %vm90 = vweird.f32 %v83
    %vm91 = vweird.f32 %v85
    %vm92 = vmor %vm90, %vm91
    %v93 = vsel %vm92, %v85, %v89
    %v94 = vand.u32 2147483647, %v83
    %vm95 = vcmp.eq.f32.partialorder %v94, 8.507059e+37
    %v96 = vand.u32 %v83, 2147483648
    %v97 = vor.u32 1.1754944e-38, %v96
    %v98 = vsel %vm95, %v97, %v93
    %v99 = vmul.f32 1.0, %v98
    %v100 = vrcp.pop %v84
    %v101 = vmul.f32 %v84, %v100
    %v102 = vsub.f32 1.0, %v101
    %v103 = vmul.f32 %v100, %v102
    %v104 = vadd.f32 %v100, %v103
    %vm105 = vweird.f32 %v84
    %vm106 = vweird.f32 %v100
    %vm107 = vmor %vm105, %vm106
    %v108 = vsel %vm107, %v100, %v104
    %v109 = vand.u32 2147483647, %v84
    %vm110 = vcmp.eq.f32.partialorder %v109, 8.507059e+37
    %v111 = vand.u32 %v84, 2147483648
    %v112 = vor.u32 1.1754944e-38, %v111
    %v113 = vsel %vm110, %v112, %v108
    %v114 = vmul.f32 1.0, %v113
    %v115 = vtanh.pop %v73
    %v116 = vtanh.pop %v75
    %v117 = vmul.f32 %v99, 0.0
    %v118 = vmul.f32 %v114, 0.0
    %121 = vrot.lane.b32.xlu0 %v115, 64
    %v122 = vpop.permute.xlu0 %121
    %123 = vrot.lane.b32.xlu0 %v116, 64
    %v124 = vpop.permute.xlu0 %123
    %v127 = vmul.f32 %v99, %v122
    %v128 = vmul.f32 %v114, %v124
    %131 = vrot.lane.b32.xlu0 %v127, 32
    %v132 = vpop.permute.xlu0 %131
    %133 = vrot.lane.b32.xlu0 %v128, 32
    %v134 = vpop.permute.xlu0 %133
    %v137 = vadd.f32 %v117, %v132
    %v138 = vadd.f32 %v118, %v134
    %v139 = vtanh.pop %v137
    %v140 = vtanh.pop %v138
    %143 = vrot.lane.b32.xlu0 %v139, 64
    %v144 = vpop.permute.xlu0 %143
    %145 = vrot.lane.b32.xlu0 %v140, 64
    %v146 = vpop.permute.xlu0 %145
    %v149 = vmul.f32 %v99, %v144
    %v150 = vmul.f32 %v114, %v146
    %v151 = vpack.c.bf16 %v149, %v149
    %v152 = vpack.c.bf16 %v150, %v150
    %v155 = vunpack.c.l.b16 %v151
    %v156 = vunpack.c.l.b16 %v152
    %v157 = vrot.slane %v156, 7
    %vm158 = vcmask 1041409
    %v159 = vsel %vm158, %v157, %v155
    %v160 = vpack.c.b16 %v159, %v159
    %161 = vrot.lane.b32.xlu0 %v160, 32
    %v162 = vpop.permute.xlu0 %161
    %v167 = vunpack.c.l.b16 %v21
    %v168 = vunpack.c.l.b16 %v22
    %v169 = vunpack.c.l.b16 %v23
    %v170 = vunpack.c.l.b16 %v24
    %v171 = vpack.c.b16 %v168, %v167
    %v172 = vpack.c.b16 %v170, %v169
    %vm175 = vcmask 261120
    %v177 = vsel %vm175, %v162, 0
    %179 = vmatpush.bf16.msra.mxu0 0
    %180 = vmatpush.bf16.msra.mxu0 0
    %181 = vmatpush.bf16.msra.mxu0 0
    %182 = vmatpush.bf16.msra.mxu0 0
    %183 = vmatpush.bf16.msra.mxu0 0
    %184 = vmatpush.bf16.msra.mxu0 0
    %185 = vmatpush.bf16.msra.mxu0 %v172
    %186 = vmatpush.bf16.msra.mxu0 %v171
    %187 = vmatmul.bf16.gmra.mxu0 %v177
    %v188 = vpop.f32.mrf.mxu0
    %v189 = vadd.f32 %v50, %v188
    %v190 = vpop.f32.mrf.mxu0
    %191 = vdwg.mxu0
    %v192 = vxor.u32 %v189, 2147483648
    %v193 = vmul.f32 %v192, 1.442695
    %v194 = vpow.pop %v193
    %v195 = vadd.f32 %v194, 1.0
    %v196 = vrcp.pop %v195
    %v197 = vmul.f32 %v195, %v196
    %v198 = vsub.f32 1.0, %v197
    %v199 = vmul.f32 %v196, %v198
    %v200 = vadd.f32 %v196, %v199
    %vm201 = vweird.f32 %v195
    %vm202 = vweird.f32 %v196
    %vm203 = vmor %vm201, %vm202
    %v204 = vsel %vm203, %v196, %v200
    %v205 = vand.u32 2147483647, %v195
    %vm206 = vcmp.eq.f32.partialorder %v205, 8.507059e+37
    %v207 = vand.u32 %v195, 2147483648
    %v208 = vor.u32 1.1754944e-38, %v207
    %v209 = vsel %vm206, %v208, %v204
    %v210 = vmul.f32 1.0, %v209
    %v211 = vtanh.pop %v189
    %v212 = vmul.f32 %v210, 0.0
    %214 = vrot.lane.b32.xlu0 %v211, 64
    %v215 = vpop.permute.xlu0 %214
    %v217 = vmul.f32 %v210, %v215
    %219 = vrot.lane.b32.xlu0 %v217, 32
    %v220 = vpop.permute.xlu0 %219
    %v222 = vadd.f32 %v212, %v220
    %v223 = vtanh.pop %v222
    %225 = vrot.lane.b32.xlu0 %v223, 64
    %v226 = vpop.permute.xlu0 %225
    %v228 = vmul.f32 %v210, %v226
    %v233 = vunpack.c.l.b16 %v17
    %v234 = vunpack.c.l.b16 %v18
    %v235 = vunpack.c.l.b16 %v19
    %v236 = vunpack.c.l.b16 %v20
    %v237 = vpack.c.b16 %v234, %v233
    %v238 = vpack.c.b16 %v236, %v235
    %241 = vmatpush.bf16.msra.mxu0 0
    %242 = vmatpush.bf16.msra.mxu0 0
    %243 = vmatpush.bf16.msra.mxu0 0
    %244 = vmatpush.bf16.msra.mxu0 0
    %245 = vmatpush.bf16.msra.mxu0 0
    %246 = vmatpush.bf16.msra.mxu0 0
    %247 = vmatpush.bf16.msra.mxu0 %v238
    %248 = vmatpush.bf16.msra.mxu0 %v237
    %249 = vmatmul.bf16.gmra.mxu0 %v177
    %v250 = vpop.f32.mrf.mxu0
    %v251 = vadd.f32 0.0, %v250
    %v252 = vpop.f32.mrf.mxu0
    %253 = vdwg.mxu0
    %v255 = vrot.slane %v251, 7
    %v258 = vadd.f32 %v73, %v255
    %v259 = vadd.f32 %v75, %v251
    %v260 = vxor.u32 %v258, 2147483648
    %v261 = vxor.u32 %v259, 2147483648
    %v262 = vmul.f32 %v260, 1.442695
    %v263 = vpow.pop %v262
    %v264 = vmul.f32 %v261, 1.442695
    %v265 = vpow.pop %v264
    %v266 = vadd.f32 %v263, 1.0
    %v267 = vadd.f32 %v265, 1.0
    %v268 = vrcp.pop %v266
    %v269 = vmul.f32 %v266, %v268
    %v270 = vsub.f32 1.0, %v269
    %v271 = vmul.f32 %v268, %v270
    %v272 = vadd.f32 %v268, %v271
    %vm273 = vweird.f32 %v266
    %vm274 = vweird.f32 %v268
    %vm275 = vmor %vm273, %vm274
    %v276 = vsel %vm275, %v268, %v272
    %v277 = vand.u32 2147483647, %v266
    %vm278 = vcmp.eq.f32.partialorder %v277, 8.507059e+37
    %v279 = vand.u32 %v266, 2147483648
    %v280 = vor.u32 1.1754944e-38, %v279
    %v281 = vsel %vm278, %v280, %v276
    %v282 = vmul.f32 1.0, %v281
    %v283 = vrcp.pop %v267
    %v284 = vmul.f32 %v267, %v283
    %v285 = vsub.f32 1.0, %v284
    %v286 = vmul.f32 %v283, %v285
    %v287 = vadd.f32 %v283, %v286
    %vm288 = vweird.f32 %v267
    %vm289 = vweird.f32 %v283
    %vm290 = vmor %vm288, %vm289
    %v291 = vsel %vm290, %v283, %v287
    %v292 = vand.u32 2147483647, %v267
    %vm293 = vcmp.eq.f32.partialorder %v292, 8.507059e+37
    %v294 = vand.u32 %v267, 2147483648
    %v295 = vor.u32 1.1754944e-38, %v294
    %v296 = vsel %vm293, %v295, %v291
    %v297 = vmul.f32 1.0, %v296
    %v298 = vtanh.pop %v258
    %v299 = vtanh.pop %v259
    %v302 = vrot.slane %v137, 7
    %v303 = vrot.slane %v138, 7
    %v306 = vmul.f32 %v282, %v302
    %v307 = vmul.f32 %v297, %v303
    %310 = vrot.lane.b32.xlu0 %v298, 64
    %v311 = vpop.permute.xlu0 %310
    %312 = vrot.lane.b32.xlu0 %v299, 64
    %v313 = vpop.permute.xlu0 %312
    %v316 = vmul.f32 %v282, %v311
    %v317 = vmul.f32 %v297, %v313
    %320 = vrot.lane.b32.xlu0 %v316, 32
    %v321 = vpop.permute.xlu0 %320
    %322 = vrot.lane.b32.xlu0 %v317, 32
    %v323 = vpop.permute.xlu0 %322
    %v326 = vadd.f32 %v306, %v321
    %v327 = vadd.f32 %v307, %v323
    %v328 = vtanh.pop %v326
    %v329 = vtanh.pop %v327
    %332 = vrot.lane.b32.xlu0 %v328, 64
    %v333 = vpop.permute.xlu0 %332
    %334 = vrot.lane.b32.xlu0 %v329, 64
    %v335 = vpop.permute.xlu0 %334
    %v338 = vmul.f32 %v282, %v333
    %v339 = vmul.f32 %v297, %v335
    %v342 = vrot.slane %v339, 7
    %vm343 = vcmask 1042434
    %v344 = vsel %vm343, %v342, %v338
    %345 = vrot.lane.b32.xlu0 %v344, 32
    %v346 = vpop.permute.xlu0 %345
    %v349 = vrot.slane %v228, 7
    %350 = vrot.lane.b32.xlu0 %v349, 64
    %v351 = vpop.permute.xlu0 %350
    %v353 = vsel %vm175, %v346, %v351
    %v354 = vpack.c.bf16 %v353, %v353
    %v356 = vshrl.u32 %v354, 16
    %v358 = vshll.u32 %v354, 16
    %v360 = vrot.slane %v358, 1
    %v361 = vor.u32 %v356, %v360
    %v366 = vunpack.c.l.b16 %v25
    %v367 = vunpack.c.l.b16 %v26
    %v368 = vunpack.c.l.b16 %v27
    %v369 = vunpack.c.l.b16 %v28
    %v370 = vpack.c.b16 %v367, %v366
    %v371 = vpack.c.b16 %v369, %v368
    %vm374 = vcmask 523264
    %v376 = vsel %vm374, %v361, 0
    %378 = vmatpush.bf16.msra.mxu0 0
    %379 = vmatpush.bf16.msra.mxu0 0
    %380 = vmatpush.bf16.msra.mxu0 0
    %381 = vmatpush.bf16.msra.mxu0 0
    %382 = vmatpush.bf16.msra.mxu0 %v371
    %383 = vmatpush.bf16.msra.mxu0 %v370
    %384 = vmatpush.bf16.msra.mxu0 %v172
    %385 = vmatpush.bf16.msra.mxu0 %v171
    %386 = vmatmul.bf16.gmra.mxu0 %v376
    %v387 = vpop.f32.mrf.mxu0
    %v388 = vadd.f32 %v50, %v387
    %v389 = vpop.f32.mrf.mxu0
    %390 = vdwg.mxu0
    %v391 = vxor.u32 %v388, 2147483648
    %v392 = vmul.f32 %v391, 1.442695
    %v393 = vpow.pop %v392
    %v394 = vadd.f32 %v393, 1.0
    %v395 = vrcp.pop %v394
    %v396 = vmul.f32 %v394, %v395
    %v397 = vsub.f32 1.0, %v396
    %v398 = vmul.f32 %v395, %v397
    %v399 = vadd.f32 %v395, %v398
    %vm400 = vweird.f32 %v394
    %vm401 = vweird.f32 %v395
    %vm402 = vmor %vm400, %vm401
    %v403 = vsel %vm402, %v395, %v399
    %v404 = vand.u32 2147483647, %v394
    %vm405 = vcmp.eq.f32.partialorder %v404, 8.507059e+37
    %v406 = vand.u32 %v394, 2147483648
    %v407 = vor.u32 1.1754944e-38, %v406
    %v408 = vsel %vm405, %v407, %v403
    %v409 = vmul.f32 1.0, %v408
    %v410 = vtanh.pop %v388
    %v411 = vmul.f32 %v409, %v222
    %413 = vrot.lane.b32.xlu0 %v410, 64
    %v414 = vpop.permute.xlu0 %413
    %v416 = vmul.f32 %v409, %v414
    %418 = vrot.lane.b32.xlu0 %v416, 32
    %v419 = vpop.permute.xlu0 %418
    %v421 = vadd.f32 %v411, %v419
    %v422 = vtanh.pop %v421
    %424 = vrot.lane.b32.xlu0 %v422, 64
    %v425 = vpop.permute.xlu0 %424
    %v427 = vmul.f32 %v409, %v425
    %v428 = vpack.c.bf16 %v338, %v338
    %v429 = vpack.c.bf16 %v339, %v339
    %v432 = vunpack.c.l.b16 %v428
    %v433 = vunpack.c.l.b16 %v429
    %v434 = vrot.slane %v432, 1
    %v435 = vsel %vm158, %v433, %v434
    %v436 = vpack.c.b16 %v435, %v435
    %437 = vrot.lane.b32.xlu0 %v436, 32
    %v438 = vpop.permute.xlu0 %437
    %v440 = vsel %vm175, %v438, 0
    %442 = vmatpush.bf16.msra.mxu0 0
    %443 = vmatpush.bf16.msra.mxu0 0
    %444 = vmatpush.bf16.msra.mxu0 0
    %445 = vmatpush.bf16.msra.mxu0 0
    %446 = vmatpush.bf16.msra.mxu0 0
    %447 = vmatpush.bf16.msra.mxu0 0
    %448 = vmatpush.bf16.msra.mxu0 %v238
    %449 = vmatpush.bf16.msra.mxu0 %v237
    %450 = vmatmul.bf16.gmra.mxu0 %v440
    %v451 = vpop.f32.mrf.mxu0
    %v452 = vadd.f32 0.0, %v451
    %v453 = vpop.f32.mrf.mxu0
    %454 = vdwg.mxu0
    %v456 = vrot.slane %v452, 6
    %v457 = vrot.slane %v452, 7
    %v460 = vadd.f32 %v73, %v456
    %v461 = vadd.f32 %v75, %v457
    %v462 = vxor.u32 %v460, 2147483648
    %v463 = vxor.u32 %v461, 2147483648
    %v464 = vmul.f32 %v462, 1.442695
    %v465 = vpow.pop %v464
    %v466 = vmul.f32 %v463, 1.442695
    %v467 = vpow.pop %v466
    %v468 = vadd.f32 %v465, 1.0
    %v469 = vadd.f32 %v467, 1.0
    %v470 = vrcp.pop %v468
    %v471 = vmul.f32 %v468, %v470
    %v472 = vsub.f32 1.0, %v471
    %v473 = vmul.f32 %v470, %v472
    %v474 = vadd.f32 %v470, %v473
    %vm475 = vweird.f32 %v468
    %vm476 = vweird.f32 %v470
    %vm477 = vmor %vm475, %vm476
    %v478 = vsel %vm477, %v470, %v474
    %v479 = vand.u32 2147483647, %v468
    %vm480 = vcmp.eq.f32.partialorder %v479, 8.507059e+37
    %v481 = vand.u32 %v468, 2147483648
    %v482 = vor.u32 1.1754944e-38, %v481
    %v483 = vsel %vm480, %v482, %v478
    %v484 = vmul.f32 1.0, %v483
    %v485 = vrcp.pop %v469
    %v486 = vmul.f32 %v469, %v485
    %v487 = vsub.f32 1.0, %v486
    %v488 = vmul.f32 %v485, %v487
    %v489 = vadd.f32 %v485, %v488
    %vm490 = vweird.f32 %v469
    %vm491 = vweird.f32 %v485
    %vm492 = vmor %vm490, %vm491
    %v493 = vsel %vm492, %v485, %v489
    %v494 = vand.u32 2147483647, %v469
    %vm495 = vcmp.eq.f32.partialorder %v494, 8.507059e+37
    %v496 = vand.u32 %v469, 2147483648
    %v497 = vor.u32 1.1754944e-38, %v496
    %v498 = vsel %vm495, %v497, %v493
    %v499 = vmul.f32 1.0, %v498
    %v500 = vtanh.pop %v460
    %v501 = vtanh.pop %v461
    %v504 = vrot.slane %v326, 7
    %v505 = vrot.slane %v327, 7
    %v508 = vmul.f32 %v484, %v504
    %v509 = vmul.f32 %v499, %v505
    %512 = vrot.lane.b32.xlu0 %v500, 64
    %v513 = vpop.permute.xlu0 %512
    %514 = vrot.lane.b32.xlu0 %v501, 64
    %v515 = vpop.permute.xlu0 %514
    %v518 = vmul.f32 %v484, %v513
    %v519 = vmul.f32 %v499, %v515
    %522 = vrot.lane.b32.xlu0 %v518, 32
    %v523 = vpop.permute.xlu0 %522
    %524 = vrot.lane.b32.xlu0 %v519, 32
    %v525 = vpop.permute.xlu0 %524
    %v528 = vadd.f32 %v508, %v523
    %v529 = vadd.f32 %v509, %v525
    %v530 = vtanh.pop %v528
    %v531 = vtanh.pop %v529
    %534 = vrot.lane.b32.xlu0 %v530, 64
    %v535 = vpop.permute.xlu0 %534
    %536 = vrot.lane.b32.xlu0 %v531, 64
    %v537 = vpop.permute.xlu0 %536
    %v540 = vmul.f32 %v484, %v535
    %v541 = vmul.f32 %v499, %v537
    %v544 = vrot.slane %v541, 7
    %vm545 = vcmask 1043459
    %v546 = vsel %vm545, %v544, %v540
    %547 = vrot.lane.b32.xlu0 %v546, 32
    %v548 = vpop.permute.xlu0 %547
    %v551 = vrot.slane %v427, 6
    %552 = vrot.lane.b32.xlu0 %v551, 64
    %v553 = vpop.permute.xlu0 %552
    %v555 = vsel %vm175, %v548, %v553
    %v556 = vpack.c.bf16 %v555, %v555
    %v558 = vrot.slane %v556, 1
    %v560 = vsel %vm374, %v558, 0
    %562 = vmatpush.bf16.msra.mxu0 0
    %563 = vmatpush.bf16.msra.mxu0 0
    %564 = vmatpush.bf16.msra.mxu0 0
    %565 = vmatpush.bf16.msra.mxu0 0
    %566 = vmatpush.bf16.msra.mxu0 %v371
    %567 = vmatpush.bf16.msra.mxu0 %v370
    %568 = vmatpush.bf16.msra.mxu0 %v172
    %569 = vmatpush.bf16.msra.mxu0 %v171
    %570 = vmatmul.bf16.gmra.mxu0 %v560
    %v571 = vpop.f32.mrf.mxu0
    %v572 = vadd.f32 %v50, %v571
    %v573 = vpop.f32.mrf.mxu0
    %574 = vdwg.mxu0
    %v575 = vxor.u32 %v572, 2147483648
    %v576 = vmul.f32 %v575, 1.442695
    %v577 = vpow.pop %v576
    %v578 = vadd.f32 %v577, 1.0
    %v579 = vrcp.pop %v578
    %v580 = vmul.f32 %v578, %v579
    %v581 = vsub.f32 1.0, %v580
    %v582 = vmul.f32 %v579, %v581
    %v583 = vadd.f32 %v579, %v582
    %vm584 = vweird.f32 %v578
    %vm585 = vweird.f32 %v579
    %vm586 = vmor %vm584, %vm585
    %v587 = vsel %vm586, %v579, %v583
    %v588 = vand.u32 2147483647, %v578
    %vm589 = vcmp.eq.f32.partialorder %v588, 8.507059e+37
    %v590 = vand.u32 %v578, 2147483648
    %v591 = vor.u32 1.1754944e-38, %v590
    %v592 = vsel %vm589, %v591, %v587
    %v593 = vmul.f32 1.0, %v592
    %v594 = vtanh.pop %v572
    %v595 = vmul.f32 %v593, %v421
    %597 = vrot.lane.b32.xlu0 %v594, 64
    %v598 = vpop.permute.xlu0 %597
    %v600 = vmul.f32 %v593, %v598
    %602 = vrot.lane.b32.xlu0 %v600, 32
    %v603 = vpop.permute.xlu0 %602
    %v605 = vadd.f32 %v595, %v603
    %v606 = vtanh.pop %v605
    %608 = vrot.lane.b32.xlu0 %v606, 64
    %v609 = vpop.permute.xlu0 %608
    %v611 = vmul.f32 %v593, %v609
    %v612 = vpack.c.bf16 %v540, %v540
    %v613 = vpack.c.bf16 %v541, %v541
    %v616 = vunpack.c.l.b16 %v612
    %v617 = vunpack.c.l.b16 %v613
    %v618 = vrot.slane %v616, 2
    %v619 = vrot.slane %v617, 1
    %v620 = vsel %vm158, %v619, %v618
    %v621 = vpack.c.b16 %v620, %v620
    %622 = vrot.lane.b32.xlu0 %v621, 32
    %v623 = vpop.permute.xlu0 %622
    %v625 = vsel %vm175, %v623, 0
    %627 = vmatpush.bf16.msra.mxu0 0
    %628 = vmatpush.bf16.msra.mxu0 0
    %629 = vmatpush.bf16.msra.mxu0 0
    %630 = vmatpush.bf16.msra.mxu0 0
    %631 = vmatpush.bf16.msra.mxu0 0
    %632 = vmatpush.bf16.msra.mxu0 0
    %633 = vmatpush.bf16.msra.mxu0 %v238
    %634 = vmatpush.bf16.msra.mxu0 %v237
    %635 = vmatmul.bf16.gmra.mxu0 %v625
    %v636 = vpop.f32.mrf.mxu0
    %v637 = vadd.f32 0.0, %v636
    %v638 = vpop.f32.mrf.mxu0
    %639 = vdwg.mxu0
    %v641 = vrot.slane %v637, 5
    %v642 = vrot.slane %v637, 6
    %v645 = vadd.f32 %v73, %v641
    %v646 = vadd.f32 %v75, %v642
    %v647 = vxor.u32 %v645, 2147483648
    %v648 = vxor.u32 %v646, 2147483648
    %v649 = vmul.f32 %v647, 1.442695
    %v650 = vpow.pop %v649
    %v651 = vmul.f32 %v648, 1.442695
    %v652 = vpow.pop %v651
    %v653 = vadd.f32 %v650, 1.0
    %v654 = vadd.f32 %v652, 1.0
    %v655 = vrcp.pop %v653
    %v656 = vmul.f32 %v653, %v655
    %v657 = vsub.f32 1.0, %v656
    %v658 = vmul.f32 %v655, %v657
    %v659 = vadd.f32 %v655, %v658
    %vm660 = vweird.f32 %v653
    %vm661 = vweird.f32 %v655
    %vm662 = vmor %vm660, %vm661
    %v663 = vsel %vm662, %v655, %v659
    %v664 = vand.u32 2147483647, %v653
    %vm665 = vcmp.eq.f32.partialorder %v664, 8.507059e+37
    %v666 = vand.u32 %v653, 2147483648
    %v667 = vor.u32 1.1754944e-38, %v666
    %v668 = vsel %vm665, %v667, %v663
    %v669 = vmul.f32 1.0, %v668
    %v670 = vrcp.pop %v654
    %v671 = vmul.f32 %v654, %v670
    %v672 = vsub.f32 1.0, %v671
    %v673 = vmul.f32 %v670, %v672
    %v674 = vadd.f32 %v670, %v673
    %vm675 = vweird.f32 %v654
    %vm676 = vweird.f32 %v670
    %vm677 = vmor %vm675, %vm676
    %v678 = vsel %vm677, %v670, %v674
    %v679 = vand.u32 2147483647, %v654
    %vm680 = vcmp.eq.f32.partialorder %v679, 8.507059e+37
    %v681 = vand.u32 %v654, 2147483648
    %v682 = vor.u32 1.1754944e-38, %v681
    %v683 = vsel %vm680, %v682, %v678
    %v684 = vmul.f32 1.0, %v683
    %v685 = vtanh.pop %v645
    %v686 = vtanh.pop %v646
    %v689 = vrot.slane %v528, 7
    %v690 = vrot.slane %v529, 7
    %v693 = vmul.f32 %v669, %v689
    %v694 = vmul.f32 %v684, %v690
    %697 = vrot.lane.b32.xlu0 %v685, 64
    %v698 = vpop.permute.xlu0 %697
    %699 = vrot.lane.b32.xlu0 %v686, 64
    %v700 = vpop.permute.xlu0 %699
    %v703 = vmul.f32 %v669, %v698
    %v704 = vmul.f32 %v684, %v700
    %707 = vrot.lane.b32.xlu0 %v703, 32
    %v708 = vpop.permute.xlu0 %707
    %709 = vrot.lane.b32.xlu0 %v704, 32
    %v710 = vpop.permute.xlu0 %709
    %v713 = vadd.f32 %v693, %v708
    %v714 = vadd.f32 %v694, %v710
    %v715 = vtanh.pop %v713
    %v716 = vtanh.pop %v714
    %719 = vrot.lane.b32.xlu0 %v715, 64
    %v720 = vpop.permute.xlu0 %719
    %721 = vrot.lane.b32.xlu0 %v716, 64
    %v722 = vpop.permute.xlu0 %721
    %v725 = vmul.f32 %v669, %v720
    %v726 = vmul.f32 %v684, %v722
    %v729 = vrot.slane %v726, 7
    %vm730 = vcmask 1044484
    %v731 = vsel %vm730, %v729, %v725
    %732 = vrot.lane.b32.xlu0 %v731, 32
    %v733 = vpop.permute.xlu0 %732
    %v736 = vrot.slane %v611, 5
    %737 = vrot.lane.b32.xlu0 %v736, 64
    %v738 = vpop.permute.xlu0 %737
    %v740 = vsel %vm175, %v733, %v738
    %v741 = vpack.c.bf16 %v740, %v740
    %v743 = vshrl.u32 %v741, 16
    %v745 = vrot.slane %v743, 1
    %v746 = vshll.u32 %v741, 16
    %v748 = vrot.slane %v746, 2
    %v749 = vor.u32 %v745, %v748
    %v751 = vsel %vm374, %v749, 0
    %753 = vmatpush.bf16.msra.mxu0 0
    %754 = vmatpush.bf16.msra.mxu0 0
    %755 = vmatpush.bf16.msra.mxu0 0
    %756 = vmatpush.bf16.msra.mxu0 0
    %757 = vmatpush.bf16.msra.mxu0 %v371
    %758 = vmatpush.bf16.msra.mxu0 %v370
    %759 = vmatpush.bf16.msra.mxu0 %v172
    %760 = vmatpush.bf16.msra.mxu0 %v171
    %761 = vmatmul.bf16.gmra.mxu0 %v751
    %v762 = vpop.f32.mrf.mxu0
    %v763 = vadd.f32 %v50, %v762
    %v764 = vpop.f32.mrf.mxu0
    %765 = vdwg.mxu0
    %v766 = vxor.u32 %v763, 2147483648
    %v767 = vmul.f32 %v766, 1.442695
    %v768 = vpow.pop %v767
    %v769 = vadd.f32 %v768, 1.0
    %v770 = vrcp.pop %v769
    %v771 = vmul.f32 %v769, %v770
    %v772 = vsub.f32 1.0, %v771
    %v773 = vmul.f32 %v770, %v772
    %v774 = vadd.f32 %v770, %v773
    %vm775 = vweird.f32 %v769
    %vm776 = vweird.f32 %v770
    %vm777 = vmor %vm775, %vm776
    %v778 = vsel %vm777, %v770, %v774
    %v779 = vand.u32 2147483647, %v769
    %vm780 = vcmp.eq.f32.partialorder %v779, 8.507059e+37
    %v781 = vand.u32 %v769, 2147483648
    %v782 = vor.u32 1.1754944e-38, %v781
    %v783 = vsel %vm780, %v782, %v778
    %v784 = vmul.f32 1.0, %v783
    %v785 = vtanh.pop %v763
    %v786 = vmul.f32 %v784, %v605
    %788 = vrot.lane.b32.xlu0 %v785, 64
    %v789 = vpop.permute.xlu0 %788
    %v791 = vmul.f32 %v784, %v789
    %793 = vrot.lane.b32.xlu0 %v791, 32
    %v794 = vpop.permute.xlu0 %793
    %v796 = vadd.f32 %v786, %v794
    %v797 = vtanh.pop %v796
    %799 = vrot.lane.b32.xlu0 %v797, 64
    %v800 = vpop.permute.xlu0 %799
    %v802 = vmul.f32 %v784, %v800
    %v803 = vpack.c.bf16 %v725, %v725
    %v804 = vpack.c.bf16 %v726, %v726
    %v807 = vunpack.c.l.b16 %v803
    %v808 = vunpack.c.l.b16 %v804
    %v809 = vrot.slane %v807, 3
    %v810 = vrot.slane %v808, 2
    %v811 = vsel %vm158, %v810, %v809
    %v812 = vpack.c.b16 %v811, %v811
    %813 = vrot.lane.b32.xlu0 %v812, 32
    %v814 = vpop.permute.xlu0 %813
    %v816 = vsel %vm175, %v814, 0
    %818 = vmatpush.bf16.msra.mxu0 0
    %819 = vmatpush.bf16.msra.mxu0 0
    %820 = vmatpush.bf16.msra.mxu0 0
    %821 = vmatpush.bf16.msra.mxu0 0
    %822 = vmatpush.bf16.msra.mxu0 0
    %823 = vmatpush.bf16.msra.mxu0 0
    %824 = vmatpush.bf16.msra.mxu0 %v238
    %825 = vmatpush.bf16.msra.mxu0 %v237
    %826 = vmatmul.bf16.gmra.mxu0 %v816
    %v827 = vpop.f32.mrf.mxu0
    %v828 = vadd.f32 0.0, %v827
    %v829 = vpop.f32.mrf.mxu0
    %830 = vdwg.mxu0
    %v832 = vrot.slane %v828, 4
    %v833 = vrot.slane %v828, 5
    %v836 = vadd.f32 %v73, %v832
    %v837 = vadd.f32 %v75, %v833
    %v838 = vxor.u32 %v836, 2147483648
    %v839 = vxor.u32 %v837, 2147483648
    %v840 = vmul.f32 %v838, 1.442695
    %v841 = vpow.pop %v840
    %v842 = vmul.f32 %v839, 1.442695
    %v843 = vpow.pop %v842
    %v844 = vadd.f32 %v841, 1.0
    %v845 = vadd.f32 %v843, 1.0
    %v846 = vrcp.pop %v844
    %v847 = vmul.f32 %v844, %v846
    %v848 = vsub.f32 1.0, %v847
    %v849 = vmul.f32 %v846, %v848
    %v850 = vadd.f32 %v846, %v849
    %vm851 = vweird.f32 %v844
    %vm852 = vweird.f32 %v846
    %vm853 = vmor %vm851, %vm852
    %v854 = vsel %vm853, %v846, %v850
    %v855 = vand.u32 2147483647, %v844
    %vm856 = vcmp.eq.f32.partialorder %v855, 8.507059e+37
    %v857 = vand.u32 %v844, 2147483648
    %v858 = vor.u32 1.1754944e-38, %v857
    %v859 = vsel %vm856, %v858, %v854
    %v860 = vmul.f32 1.0, %v859
    %v861 = vrcp.pop %v845
    %v862 = vmul.f32 %v845, %v861
    %v863 = vsub.f32 1.0, %v862
    %v864 = vmul.f32 %v861, %v863
    %v865 = vadd.f32 %v861, %v864
    %vm866 = vweird.f32 %v845
    %vm867 = vweird.f32 %v861
    %vm868 = vmor %vm866, %vm867
    %v869 = vsel %vm868, %v861, %v865
    %v870 = vand.u32 2147483647, %v845
    %vm871 = vcmp.eq.f32.partialorder %v870, 8.507059e+37
    %v872 = vand.u32 %v845, 2147483648
    %v873 = vor.u32 1.1754944e-38, %v872
    %v874 = vsel %vm871, %v873, %v869
    %v875 = vmul.f32 1.0, %v874
    %v876 = vtanh.pop %v836
    %v877 = vtanh.pop %v837
    %v880 = vrot.slane %v713, 7
    %v881 = vrot.slane %v714, 7
    %v884 = vmul.f32 %v860, %v880
    %v885 = vmul.f32 %v875, %v881
    %888 = vrot.lane.b32.xlu0 %v876, 64
    %v889 = vpop.permute.xlu0 %888
    %890 = vrot.lane.b32.xlu0 %v877, 64
    %v891 = vpop.permute.xlu0 %890
    %v894 = vmul.f32 %v860, %v889
    %v895 = vmul.f32 %v875, %v891
    %898 = vrot.lane.b32.xlu0 %v894, 32
    %v899 = vpop.permute.xlu0 %898
    %900 = vrot.lane.b32.xlu0 %v895, 32
    %v901 = vpop.permute.xlu0 %900
    %v904 = vadd.f32 %v884, %v899
    %v905 = vadd.f32 %v885, %v901
    %v906 = vtanh.pop %v904
    %v907 = vtanh.pop %v905
    %910 = vrot.lane.b32.xlu0 %v906, 64
    %v911 = vpop.permute.xlu0 %910
    %912 = vrot.lane.b32.xlu0 %v907, 64
    %v913 = vpop.permute.xlu0 %912
    %v916 = vmul.f32 %v860, %v911
    %v917 = vmul.f32 %v875, %v913
    %v920 = vrot.slane %v917, 7
    %vm921 = vcmask 1045509
    %v922 = vsel %vm921, %v920, %v916
    %923 = vrot.lane.b32.xlu0 %v922, 32
    %v924 = vpop.permute.xlu0 %923
    %v927 = vrot.slane %v802, 4
    %928 = vrot.lane.b32.xlu0 %v927, 64
    %v929 = vpop.permute.xlu0 %928
    %v931 = vsel %vm175, %v924, %v929
    %v932 = vpack.c.bf16 %v931, %v931
    %v934 = vrot.slane %v932, 2
    %v936 = vsel %vm374, %v934, 0
    %938 = vmatpush.bf16.msra.mxu0 0
    %939 = vmatpush.bf16.msra.mxu0 0
    %940 = vmatpush.bf16.msra.mxu0 0
    %941 = vmatpush.bf16.msra.mxu0 0
    %942 = vmatpush.bf16.msra.mxu0 %v371
    %943 = vmatpush.bf16.msra.mxu0 %v370
    %944 = vmatpush.bf16.msra.mxu0 %v172
    %945 = vmatpush.bf16.msra.mxu0 %v171
    %946 = vmatmul.bf16.gmra.mxu0 %v936
    %v947 = vpop.f32.mrf.mxu0
    %v948 = vadd.f32 %v50, %v947
    %v949 = vpop.f32.mrf.mxu0
    %950 = vdwg.mxu0
    %v951 = vxor.u32 %v948, 2147483648
    %v952 = vmul.f32 %v951, 1.442695
    %v953 = vpow.pop %v952
    %v954 = vadd.f32 %v953, 1.0
    %v955 = vrcp.pop %v954
    %v956 = vmul.f32 %v954, %v955
    %v957 = vsub.f32 1.0, %v956
    %v958 = vmul.f32 %v955, %v957
    %v959 = vadd.f32 %v955, %v958
    %vm960 = vweird.f32 %v954
    %vm961 = vweird.f32 %v955
    %vm962 = vmor %vm960, %vm961
    %v963 = vsel %vm962, %v955, %v959
    %v964 = vand.u32 2147483647, %v954
    %vm965 = vcmp.eq.f32.partialorder %v964, 8.507059e+37
    %v966 = vand.u32 %v954, 2147483648
    %v967 = vor.u32 1.1754944e-38, %v966
    %v968 = vsel %vm965, %v967, %v963
    %v969 = vmul.f32 1.0, %v968
    %v970 = vtanh.pop %v948
    %v971 = vmul.f32 %v969, %v796
    %973 = vrot.lane.b32.xlu0 %v970, 64
    %v974 = vpop.permute.xlu0 %973
    %v976 = vmul.f32 %v969, %v974
    %978 = vrot.lane.b32.xlu0 %v976, 32
    %v979 = vpop.permute.xlu0 %978
    %v981 = vadd.f32 %v971, %v979
    %v982 = vtanh.pop %v981
    %984 = vrot.lane.b32.xlu0 %v982, 64
    %v985 = vpop.permute.xlu0 %984
    %v987 = vmul.f32 %v969, %v985
    %v988 = vpack.c.bf16 %v916, %v916
    %v989 = vpack.c.bf16 %v917, %v917
    %v992 = vunpack.c.l.b16 %v988
    %v993 = vunpack.c.l.b16 %v989
    %v994 = vrot.slane %v992, 4
    %v995 = vrot.slane %v993, 3
    %v996 = vsel %vm158, %v995, %v994
    %v997 = vpack.c.b16 %v996, %v996
    %998 = vrot.lane.b32.xlu0 %v997, 32
    %v999 = vpop.permute.xlu0 %998
    %v1001 = vsel %vm175, %v999, 0
    %1003 = vmatpush.bf16.msra.mxu0 0
    %1004 = vmatpush.bf16.msra.mxu0 0
    %1005 = vmatpush.bf16.msra.mxu0 0
    %1006 = vmatpush.bf16.msra.mxu0 0
    %1007 = vmatpush.bf16.msra.mxu0 0
    %1008 = vmatpush.bf16.msra.mxu0 0
    %1009 = vmatpush.bf16.msra.mxu0 %v238
    %1010 = vmatpush.bf16.msra.mxu0 %v237
    %1011 = vmatmul.bf16.gmra.mxu0 %v1001
    %v1012 = vpop.f32.mrf.mxu0
    %v1013 = vadd.f32 0.0, %v1012
    %v1014 = vpop.f32.mrf.mxu0
    %1015 = vdwg.mxu0
    %v1017 = vrot.slane %v1013, 3
    %v1018 = vrot.slane %v1013, 4
    %v1021 = vadd.f32 %v73, %v1017
    %v1022 = vadd.f32 %v75, %v1018
    %v1023 = vxor.u32 %v1021, 2147483648
    %v1024 = vxor.u32 %v1022, 2147483648
    %v1025 = vmul.f32 %v1023, 1.442695
    %v1026 = vpow.pop %v1025
    %v1027 = vmul.f32 %v1024, 1.442695
    %v1028 = vpow.pop %v1027
    %v1029 = vadd.f32 %v1026, 1.0
    %v1030 = vadd.f32 %v1028, 1.0
    %v1031 = vrcp.pop %v1029
    %v1032 = vmul.f32 %v1029, %v1031
    %v1033 = vsub.f32 1.0, %v1032
    %v1034 = vmul.f32 %v1031, %v1033
    %v1035 = vadd.f32 %v1031, %v1034
    %vm1036 = vweird.f32 %v1029
    %vm1037 = vweird.f32 %v1031
    %vm1038 = vmor %vm1036, %vm1037
    %v1039 = vsel %vm1038, %v1031, %v1035
    %v1040 = vand.u32 2147483647, %v1029
    %vm1041 = vcmp.eq.f32.partialorder %v1040, 8.507059e+37
    %v1042 = vand.u32 %v1029, 2147483648
    %v1043 = vor.u32 1.1754944e-38, %v1042
    %v1044 = vsel %vm1041, %v1043, %v1039
    %v1045 = vmul.f32 1.0, %v1044
    %v1046 = vrcp.pop %v1030
    %v1047 = vmul.f32 %v1030, %v1046
    %v1048 = vsub.f32 1.0, %v1047
    %v1049 = vmul.f32 %v1046, %v1048
    %v1050 = vadd.f32 %v1046, %v1049
    %vm1051 = vweird.f32 %v1030
    %vm1052 = vweird.f32 %v1046
    %vm1053 = vmor %vm1051, %vm1052
    %v1054 = vsel %vm1053, %v1046, %v1050
    %v1055 = vand.u32 2147483647, %v1030
    %vm1056 = vcmp.eq.f32.partialorder %v1055, 8.507059e+37
    %v1057 = vand.u32 %v1030, 2147483648
    %v1058 = vor.u32 1.1754944e-38, %v1057
    %v1059 = vsel %vm1056, %v1058, %v1054
    %v1060 = vmul.f32 1.0, %v1059
    %v1061 = vtanh.pop %v1021
    %v1062 = vtanh.pop %v1022
    %v1065 = vrot.slane %v904, 7
    %v1066 = vrot.slane %v905, 7
    %v1069 = vmul.f32 %v1045, %v1065
    %v1070 = vmul.f32 %v1060, %v1066
    %1073 = vrot.lane.b32.xlu0 %v1061, 64
    %v1074 = vpop.permute.xlu0 %1073
    %1075 = vrot.lane.b32.xlu0 %v1062, 64
    %v1076 = vpop.permute.xlu0 %1075
    %v1079 = vmul.f32 %v1045, %v1074
    %v1080 = vmul.f32 %v1060, %v1076
    %1083 = vrot.lane.b32.xlu0 %v1079, 32
    %v1084 = vpop.permute.xlu0 %1083
    %1085 = vrot.lane.b32.xlu0 %v1080, 32
    %v1086 = vpop.permute.xlu0 %1085
    %v1089 = vadd.f32 %v1069, %v1084
    %v1090 = vadd.f32 %v1070, %v1086
    %v1091 = vtanh.pop %v1089
    %v1092 = vtanh.pop %v1090
    %1095 = vrot.lane.b32.xlu0 %v1091, 64
    %v1096 = vpop.permute.xlu0 %1095
    %1097 = vrot.lane.b32.xlu0 %v1092, 64
    %v1098 = vpop.permute.xlu0 %1097
    %v1101 = vmul.f32 %v1045, %v1096
    %v1102 = vmul.f32 %v1060, %v1098
    %v1105 = vrot.slane %v1102, 7
    %vm1106 = vcmask 1046534
    %v1107 = vsel %vm1106, %v1105, %v1101
    %1108 = vrot.lane.b32.xlu0 %v1107, 32
    %v1109 = vpop.permute.xlu0 %1108
    %v1112 = vrot.slane %v987, 3
    %1113 = vrot.lane.b32.xlu0 %v1112, 64
    %v1114 = vpop.permute.xlu0 %1113
    %v1116 = vsel %vm175, %v1109, %v1114
    %v1117 = vpack.c.bf16 %v1116, %v1116
    %v1119 = vshrl.u32 %v1117, 16
    %v1121 = vrot.slane %v1119, 2
    %v1122 = vshll.u32 %v1117, 16
    %v1124 = vrot.slane %v1122, 3
    %v1125 = vor.u32 %v1121, %v1124
    %v1127 = vsel %vm374, %v1125, 0
    %1129 = vmatpush.bf16.msra.mxu0 0
    %1130 = vmatpush.bf16.msra.mxu0 0
    %1131 = vmatpush.bf16.msra.mxu0 0
    %1132 = vmatpush.bf16.msra.mxu0 0
    %1133 = vmatpush.bf16.msra.mxu0 %v371
    %1134 = vmatpush.bf16.msra.mxu0 %v370
    %1135 = vmatpush.bf16.msra.mxu0 %v172
    %1136 = vmatpush.bf16.msra.mxu0 %v171
    %1137 = vmatmul.bf16.gmra.mxu0 %v1127
    %v1138 = vpop.f32.mrf.mxu0
    %v1139 = vadd.f32 %v50, %v1138
    %v1140 = vpop.f32.mrf.mxu0
    %1141 = vdwg.mxu0
    %v1142 = vxor.u32 %v1139, 2147483648
    %v1143 = vmul.f32 %v1142, 1.442695
    %v1144 = vpow.pop %v1143
    %v1145 = vadd.f32 %v1144, 1.0
    %v1146 = vrcp.pop %v1145
    %v1147 = vmul.f32 %v1145, %v1146
    %v1148 = vsub.f32 1.0, %v1147
    %v1149 = vmul.f32 %v1146, %v1148
    %v1150 = vadd.f32 %v1146, %v1149
    %vm1151 = vweird.f32 %v1145
    %vm1152 = vweird.f32 %v1146
    %vm1153 = vmor %vm1151, %vm1152
    %v1154 = vsel %vm1153, %v1146, %v1150
    %v1155 = vand.u32 2147483647, %v1145
    %vm1156 = vcmp.eq.f32.partialorder %v1155, 8.507059e+37
    %v1157 = vand.u32 %v1145, 2147483648
    %v1158 = vor.u32 1.1754944e-38, %v1157
    %v1159 = vsel %vm1156, %v1158, %v1154
    %v1160 = vmul.f32 1.0, %v1159
    %v1161 = vtanh.pop %v1139
    %v1162 = vmul.f32 %v1160, %v981
    %1164 = vrot.lane.b32.xlu0 %v1161, 64
    %v1165 = vpop.permute.xlu0 %1164
    %v1167 = vmul.f32 %v1160, %v1165
    %1169 = vrot.lane.b32.xlu0 %v1167, 32
    %v1170 = vpop.permute.xlu0 %1169
    %v1172 = vadd.f32 %v1162, %v1170
    %v1173 = vtanh.pop %v1172
    %1175 = vrot.lane.b32.xlu0 %v1173, 64
    %v1176 = vpop.permute.xlu0 %1175
    %v1178 = vmul.f32 %v1160, %v1176
    %v1179 = vpack.c.bf16 %v1101, %v1101
    %v1180 = vpack.c.bf16 %v1102, %v1102
    %v1183 = vunpack.c.l.b16 %v1179
    %v1184 = vunpack.c.l.b16 %v1180
    %v1185 = vrot.slane %v1183, 5
    %v1186 = vrot.slane %v1184, 4
    %v1187 = vsel %vm158, %v1186, %v1185
    %v1188 = vpack.c.b16 %v1187, %v1187
    %1189 = vrot.lane.b32.xlu0 %v1188, 32
    %v1190 = vpop.permute.xlu0 %1189
    %v1192 = vsel %vm175, %v1190, 0
    %1194 = vmatpush.bf16.msra.mxu0 0
    %1195 = vmatpush.bf16.msra.mxu0 0
    %1196 = vmatpush.bf16.msra.mxu0 0
    %1197 = vmatpush.bf16.msra.mxu0 0
    %1198 = vmatpush.bf16.msra.mxu0 0
    %1199 = vmatpush.bf16.msra.mxu0 0
    %1200 = vmatpush.bf16.msra.mxu0 %v238
    %1201 = vmatpush.bf16.msra.mxu0 %v237
    %1202 = vmatmul.bf16.gmra.mxu0 %v1192
    %v1203 = vpop.f32.mrf.mxu0
    %v1204 = vadd.f32 0.0, %v1203
    %v1205 = vpop.f32.mrf.mxu0
    %1206 = vdwg.mxu0
    %v1208 = vrot.slane %v1204, 2
    %v1209 = vrot.slane %v1204, 3
    %v1212 = vadd.f32 %v73, %v1208
    %v1213 = vadd.f32 %v75, %v1209
    %v1214 = vxor.u32 %v1212, 2147483648
    %v1215 = vxor.u32 %v1213, 2147483648
    %v1216 = vmul.f32 %v1214, 1.442695
    %v1217 = vpow.pop %v1216
    %v1218 = vmul.f32 %v1215, 1.442695
    %v1219 = vpow.pop %v1218
    %v1220 = vadd.f32 %v1217, 1.0
    %v1221 = vadd.f32 %v1219, 1.0
    %v1222 = vrcp.pop %v1220
    %v1223 = vmul.f32 %v1220, %v1222
    %v1224 = vsub.f32 1.0, %v1223
    %v1225 = vmul.f32 %v1222, %v1224
    %v1226 = vadd.f32 %v1222, %v1225
    %vm1227 = vweird.f32 %v1220
    %vm1228 = vweird.f32 %v1222
    %vm1229 = vmor %vm1227, %vm1228
    %v1230 = vsel %vm1229, %v1222, %v1226
    %v1231 = vand.u32 2147483647, %v1220
    %vm1232 = vcmp.eq.f32.partialorder %v1231, 8.507059e+37
    %v1233 = vand.u32 %v1220, 2147483648
    %v1234 = vor.u32 1.1754944e-38, %v1233
    %v1235 = vsel %vm1232, %v1234, %v1230
    %v1236 = vmul.f32 1.0, %v1235
    %v1237 = vrcp.pop %v1221
    %v1238 = vmul.f32 %v1221, %v1237
    %v1239 = vsub.f32 1.0, %v1238
    %v1240 = vmul.f32 %v1237, %v1239
    %v1241 = vadd.f32 %v1237, %v1240
    %vm1242 = vweird.f32 %v1221
    %vm1243 = vweird.f32 %v1237
    %vm1244 = vmor %vm1242, %vm1243
    %v1245 = vsel %vm1244, %v1237, %v1241
    %v1246 = vand.u32 2147483647, %v1221
    %vm1247 = vcmp.eq.f32.partialorder %v1246, 8.507059e+37
    %v1248 = vand.u32 %v1221, 2147483648
    %v1249 = vor.u32 1.1754944e-38, %v1248
    %v1250 = vsel %vm1247, %v1249, %v1245
    %v1251 = vmul.f32 1.0, %v1250
    %v1252 = vtanh.pop %v1212
    %v1253 = vtanh.pop %v1213
    %v1256 = vrot.slane %v1089, 7
    %v1257 = vrot.slane %v1090, 7
    %v1260 = vmul.f32 %v1236, %v1256
    %v1261 = vmul.f32 %v1251, %v1257
    %1264 = vrot.lane.b32.xlu0 %v1252, 64
    %v1265 = vpop.permute.xlu0 %1264
    %1266 = vrot.lane.b32.xlu0 %v1253, 64
    %v1267 = vpop.permute.xlu0 %1266
    %v1270 = vmul.f32 %v1236, %v1265
    %v1271 = vmul.f32 %v1251, %v1267
    %1274 = vrot.lane.b32.xlu0 %v1270, 32
    %v1275 = vpop.permute.xlu0 %1274
    %1276 = vrot.lane.b32.xlu0 %v1271, 32
    %v1277 = vpop.permute.xlu0 %1276
    %v1280 = vadd.f32 %v1260, %v1275
    %v1281 = vadd.f32 %v1261, %v1277
    %v1282 = vtanh.pop %v1280
    %v1283 = vtanh.pop %v1281
    %1286 = vrot.lane.b32.xlu0 %v1282, 64
    %v1287 = vpop.permute.xlu0 %1286
    %1288 = vrot.lane.b32.xlu0 %v1283, 64
    %v1289 = vpop.permute.xlu0 %1288
    %v1292 = vmul.f32 %v1236, %v1287
    %v1293 = vmul.f32 %v1251, %v1289
    %v1296 = vrot.slane %v1293, 7
    %vm1297 = vcmask 1047559
    %v1298 = vsel %vm1297, %v1296, %v1292
    %1299 = vrot.lane.b32.xlu0 %v1298, 32
    %v1300 = vpop.permute.xlu0 %1299
    %v1303 = vrot.slane %v1178, 2
    %1304 = vrot.lane.b32.xlu0 %v1303, 64
    %v1305 = vpop.permute.xlu0 %1304
    %v1307 = vsel %vm175, %v1300, %v1305
    %v1308 = vpack.c.bf16 %v1307, %v1307
    %v1310 = vrot.slane %v1308, 3
    %v1312 = vsel %vm374, %v1310, 0
    %1314 = vmatpush.bf16.msra.mxu0 0
    %1315 = vmatpush.bf16.msra.mxu0 0
    %1316 = vmatpush.bf16.msra.mxu0 0
    %1317 = vmatpush.bf16.msra.mxu0 0
    %1318 = vmatpush.bf16.msra.mxu0 %v371
    %1319 = vmatpush.bf16.msra.mxu0 %v370
    %1320 = vmatpush.bf16.msra.mxu0 %v172
    %1321 = vmatpush.bf16.msra.mxu0 %v171
    %1322 = vmatmul.bf16.gmra.mxu0 %v1312
    %v1323 = vpop.f32.mrf.mxu0
    %v1324 = vadd.f32 %v50, %v1323
    %v1325 = vpop.f32.mrf.mxu0
    %1326 = vdwg.mxu0
    %v1327 = vxor.u32 %v1324, 2147483648
    %v1328 = vmul.f32 %v1327, 1.442695
    %v1329 = vpow.pop %v1328
    %v1330 = vadd.f32 %v1329, 1.0
    %v1331 = vrcp.pop %v1330
    %v1332 = vmul.f32 %v1330, %v1331
    %v1333 = vsub.f32 1.0, %v1332
    %v1334 = vmul.f32 %v1331, %v1333
    %v1335 = vadd.f32 %v1331, %v1334
    %vm1336 = vweird.f32 %v1330
    %vm1337 = vweird.f32 %v1331
    %vm1338 = vmor %vm1336, %vm1337
    %v1339 = vsel %vm1338, %v1331, %v1335
    %v1340 = vand.u32 2147483647, %v1330
    %vm1341 = vcmp.eq.f32.partialorder %v1340, 8.507059e+37
    %v1342 = vand.u32 %v1330, 2147483648
    %v1343 = vor.u32 1.1754944e-38, %v1342
    %v1344 = vsel %vm1341, %v1343, %v1339
    %v1345 = vmul.f32 1.0, %v1344
    %v1346 = vtanh.pop %v1324
    %v1347 = vmul.f32 %v1345, %v1172
    %1349 = vrot.lane.b32.xlu0 %v1346, 64
    %v1350 = vpop.permute.xlu0 %1349
    %v1352 = vmul.f32 %v1345, %v1350
    %1354 = vrot.lane.b32.xlu0 %v1352, 32
    %v1355 = vpop.permute.xlu0 %1354
    %v1357 = vadd.f32 %v1347, %v1355
    %v1358 = vtanh.pop %v1357
    %1360 = vrot.lane.b32.xlu0 %v1358, 64
    %v1361 = vpop.permute.xlu0 %1360
    %v1363 = vmul.f32 %v1345, %v1361
    %v1364 = vpack.c.bf16 %v1292, %v1292
    %v1365 = vpack.c.bf16 %v1293, %v1293
    %v1368 = vunpack.c.l.b16 %v1364
    %v1369 = vunpack.c.l.b16 %v1365
    %v1370 = vrot.slane %v1368, 6
    %v1371 = vrot.slane %v1369, 5
    %v1372 = vsel %vm158, %v1371, %v1370
    %v1373 = vpack.c.b16 %v1372, %v1372
    %1374 = vrot.lane.b32.xlu0 %v1373, 32
    %v1375 = vpop.permute.xlu0 %1374
    %v1377 = vsel %vm175, %v1375, 0
    %1379 = vmatpush.bf16.msra.mxu0 0
    %1380 = vmatpush.bf16.msra.mxu0 0
    %1381 = vmatpush.bf16.msra.mxu0 0
    %1382 = vmatpush.bf16.msra.mxu0 0
    %1383 = vmatpush.bf16.msra.mxu0 0
    %1384 = vmatpush.bf16.msra.mxu0 0
    %1385 = vmatpush.bf16.msra.mxu0 %v238
    %1386 = vmatpush.bf16.msra.mxu0 %v237
    %1387 = vmatmul.bf16.gmra.mxu0 %v1377
    %v1388 = vpop.f32.mrf.mxu0
    %v1389 = vadd.f32 0.0, %v1388
    %v1390 = vpop.f32.mrf.mxu0
    %1391 = vdwg.mxu0
    %v1393 = vrot.slane %v1389, 1
    %v1394 = vrot.slane %v1389, 2
    %v1397 = vadd.f32 %v73, %v1393
    %v1398 = vadd.f32 %v75, %v1394
    %v1399 = vxor.u32 %v1397, 2147483648
    %v1400 = vxor.u32 %v1398, 2147483648
    %v1401 = vmul.f32 %v1399, 1.442695
    %v1402 = vpow.pop %v1401
    %v1403 = vmul.f32 %v1400, 1.442695
    %v1404 = vpow.pop %v1403
    %v1405 = vadd.f32 %v1402, 1.0
    %v1406 = vadd.f32 %v1404, 1.0
    %v1407 = vrcp.pop %v1405
    %v1408 = vmul.f32 %v1405, %v1407
    %v1409 = vsub.f32 1.0, %v1408
    %v1410 = vmul.f32 %v1407, %v1409
    %v1411 = vadd.f32 %v1407, %v1410
    %vm1412 = vweird.f32 %v1405
    %vm1413 = vweird.f32 %v1407
    %vm1414 = vmor %vm1412, %vm1413
    %v1415 = vsel %vm1414, %v1407, %v1411
    %v1416 = vand.u32 2147483647, %v1405
    %vm1417 = vcmp.eq.f32.partialorder %v1416, 8.507059e+37
    %v1418 = vand.u32 %v1405, 2147483648
    %v1419 = vor.u32 1.1754944e-38, %v1418
    %v1420 = vsel %vm1417, %v1419, %v1415
    %v1421 = vmul.f32 1.0, %v1420
    %v1422 = vrcp.pop %v1406
    %v1423 = vmul.f32 %v1406, %v1422
    %v1424 = vsub.f32 1.0, %v1423
    %v1425 = vmul.f32 %v1422, %v1424
    %v1426 = vadd.f32 %v1422, %v1425
    %vm1427 = vweird.f32 %v1406
    %vm1428 = vweird.f32 %v1422
    %vm1429 = vmor %vm1427, %vm1428
    %v1430 = vsel %vm1429, %v1422, %v1426
    %v1431 = vand.u32 2147483647, %v1406
    %vm1432 = vcmp.eq.f32.partialorder %v1431, 8.507059e+37
    %v1433 = vand.u32 %v1406, 2147483648
    %v1434 = vor.u32 1.1754944e-38, %v1433
    %v1435 = vsel %vm1432, %v1434, %v1430
    %v1436 = vmul.f32 1.0, %v1435
    %v1437 = vtanh.pop %v1397
    %v1438 = vtanh.pop %v1398
    %v1441 = vrot.slane %v1280, 7
    %v1442 = vrot.slane %v1281, 7
    %v1445 = vmul.f32 %v1421, %v1441
    %v1446 = vmul.f32 %v1436, %v1442
    %1449 = vrot.lane.b32.xlu0 %v1437, 64
    %v1450 = vpop.permute.xlu0 %1449
    %1451 = vrot.lane.b32.xlu0 %v1438, 64
    %v1452 = vpop.permute.xlu0 %1451
    %v1455 = vmul.f32 %v1421, %v1450
    %v1456 = vmul.f32 %v1436, %v1452
    %1459 = vrot.lane.b32.xlu0 %v1455, 32
    %v1460 = vpop.permute.xlu0 %1459
    %1461 = vrot.lane.b32.xlu0 %v1456, 32
    %v1462 = vpop.permute.xlu0 %1461
    %v1465 = vadd.f32 %v1445, %v1460
    %v1466 = vadd.f32 %v1446, %v1462
    %v1467 = vtanh.pop %v1465
    %v1468 = vtanh.pop %v1466
    %1471 = vrot.lane.b32.xlu0 %v1467, 64
    %v1472 = vpop.permute.xlu0 %1471
    %1473 = vrot.lane.b32.xlu0 %v1468, 64
    %v1474 = vpop.permute.xlu0 %1473
    %v1477 = vmul.f32 %v1421, %v1472
    %v1478 = vmul.f32 %v1436, %v1474
    %v1481 = vrot.slane %v1478, 7
    %1482 = vrot.lane.b32.xlu0 %v1477, 32
    %v1483 = vpop.permute.xlu0 %1482
    %1484 = vrot.lane.b32.xlu0 %v1481, 32
    %v1485 = vpop.permute.xlu0 %1484
    %v1489 = vrot.slane %v1363, 1
    %1490 = vrot.lane.b32.xlu0 %v1489, 64
    %v1491 = vpop.permute.xlu0 %1490
    %v1493 = vsel %vm175, %v1483, %v1491
    %v1494 = vsel %vm175, %v1485, %v1491
    %v1495 = vpack.c.bf16 %v1494, %v1493
    %v1497 = vshrl.u32 %v1495, 16
    %v1499 = vrot.slane %v1497, 3
    %v1500 = vshll.u32 %v1495, 16
    %v1502 = vrot.slane %v1500, 4
    %v1503 = vor.u32 %v1499, %v1502
    %v1505 = vsel %vm374, %v1503, 0
    %1507 = vmatpush.bf16.msra.mxu0 0
    %1508 = vmatpush.bf16.msra.mxu0 0
    %1509 = vmatpush.bf16.msra.mxu0 0
    %1510 = vmatpush.bf16.msra.mxu0 0
    %1511 = vmatpush.bf16.msra.mxu0 %v371
    %1512 = vmatpush.bf16.msra.mxu0 %v370
    %1513 = vmatpush.bf16.msra.mxu0 %v172
    %1514 = vmatpush.bf16.msra.mxu0 %v171
    %1515 = vmatmul.bf16.gmra.mxu0 %v1505
    %v1516 = vpop.f32.mrf.mxu0
    %v1517 = vadd.f32 %v50, %v1516
    %v1518 = vpop.f32.mrf.mxu0
    %1519 = vdwg.mxu0
    %v1520 = vxor.u32 %v1517, 2147483648
    %v1521 = vmul.f32 %v1520, 1.442695
    %v1522 = vpow.pop %v1521
    %v1523 = vadd.f32 %v1522, 1.0
    %v1524 = vrcp.pop %v1523
    %v1525 = vmul.f32 %v1523, %v1524
    %v1526 = vsub.f32 1.0, %v1525
    %v1527 = vmul.f32 %v1524, %v1526
    %v1528 = vadd.f32 %v1524, %v1527
    %vm1529 = vweird.f32 %v1523
    %vm1530 = vweird.f32 %v1524
    %vm1531 = vmor %vm1529, %vm1530
    %v1532 = vsel %vm1531, %v1524, %v1528
    %v1533 = vand.u32 2147483647, %v1523
    %vm1534 = vcmp.eq.f32.partialorder %v1533, 8.507059e+37
    %v1535 = vand.u32 %v1523, 2147483648
    %v1536 = vor.u32 1.1754944e-38, %v1535
    %v1537 = vsel %vm1534, %v1536, %v1532
    %v1538 = vmul.f32 1.0, %v1537
    %v1539 = vtanh.pop %v1517
    %v1540 = vmul.f32 %v1538, %v1357
    %1542 = vrot.lane.b32.xlu0 %v1539, 64
    %v1543 = vpop.permute.xlu0 %1542
    %v1545 = vmul.f32 %v1538, %v1543
    %1547 = vrot.lane.b32.xlu0 %v1545, 32
    %v1548 = vpop.permute.xlu0 %1547
    %v1550 = vadd.f32 %v1540, %v1548
    %v1551 = vtanh.pop %v1550
    %1553 = vrot.lane.b32.xlu0 %v1551, 64
    %v1554 = vpop.permute.xlu0 %1553
    %v1556 = vmul.f32 %v1538, %v1554
    %v1558 = vrot.slane %v611, 4
    %v1560 = vrot.slane %v802, 2
    %v1562 = vrot.slane %v1178, 6
    %v1564 = vrot.slane %v1363, 4
    %v1567 = vrot.slane %v1556, 2
    %vm1569 = vcmask 1041408
    %v1570 = vsel %vm1569, %v228, %v551
    %v1571 = vsel %vm59, %v1570, %v1558
    %vm1572 = vcmask 1045504
    %v1573 = vsel %vm1572, %v1571, %v1560
    %v1574 = vsel %vm1569, %v987, %v1562
    %v1575 = vsel %vm59, %v1574, %v1564
    %v1576 = vsel %vm1572, %v1575, %v1567
    %v1577 = vpack.c.bf16 %v1576, %v1573
    %v1579 = vperm.slane %v48, 0
    %v1580 = vperm.slane %v48, 1
    %1584 = vrot.lane.b32.xlu0 %v1577, 32
    %v1585 = vpop.permute.xlu0 %1584
    %v1590 = vunpack.c.l.b16 %v29
    %v1591 = vunpack.c.h.b16 %v29
    %v1592 = vunpack.c.l.b16 %v30
    %v1593 = vunpack.c.h.b16 %v30
    %v1594 = vunpack.c.l.b16 %v31
    %v1595 = vunpack.c.h.b16 %v31
    %v1596 = vunpack.c.l.b16 %v32
    %v1597 = vunpack.c.h.b16 %v32
    %v1598 = vpack.c.b16 %v1592, %v1590
    %v1599 = vpack.c.b16 %v1593, %v1591
    %v1600 = vpack.c.b16 %v1596, %v1594
    %v1601 = vpack.c.b16 %v1597, %v1595
    %v1607 = vsel %vm175, %v1585, 0
    %1609 = vmatpush.bf16.msra.mxu0 0
    %1610 = vmatpush.bf16.msra.mxu0 0
    %1611 = vmatpush.bf16.msra.mxu0 0
    %1612 = vmatpush.bf16.msra.mxu0 0
    %1613 = vmatpush.bf16.msra.mxu0 0
    %1614 = vmatpush.bf16.msra.mxu0 0
    %1615 = vmatpush.bf16.msra.mxu0 %v1600
    %1616 = vmatpush.bf16.msra.mxu0 %v1598
    %1617 = vmatmul.bf16.gmra.mxu0 %v1607
    %v1618 = vpop.f32.mrf.mxu0
    %v1619 = vadd.f32 %v1579, %v1618
    %v1620 = vpop.f32.mrf.mxu0
    %v1621 = vadd.f32 %v1579, %v1620
    %1622 = vdwg.mxu0
    %1623 = vmatpush.bf16.msra.mxu0 0
    %1624 = vmatpush.bf16.msra.mxu0 0
    %1625 = vmatpush.bf16.msra.mxu0 0
    %1626 = vmatpush.bf16.msra.mxu0 0
    %1627 = vmatpush.bf16.msra.mxu0 0
    %1628 = vmatpush.bf16.msra.mxu0 0
    %1629 = vmatpush.bf16.msra.mxu0 %v1601
    %1630 = vmatpush.bf16.msra.mxu0 %v1599
    %1631 = vmatmul.bf16.gmra.mxu0 %v1607
    %v1632 = vpop.f32.mrf.mxu0
    %v1633 = vadd.f32 %v1580, %v1632
    %v1634 = vpop.f32.mrf.mxu0
    %v1635 = vadd.f32 %v1580, %v1634
    %1636 = vdwg.mxu0
    %v1638 = vrot.slane %v1621, 6
    %1639 = vrot.lane.b32.xlu0 %v1638, 64
    %v1640 = vpop.permute.xlu0 %1639
    %v1642 = vmul.f32 %v1619, %v1640
    %1644 = vrot.lane.b32.xlu0 %v1642, 64
    %v1645 = vpop.permute.xlu0 %1644
    %vm1647 = vcmask 517120
    %v1648 = vsel %vm1647, %v1645, 0.0
    %1649 = vadd.xlane.f32.xlu0 %v1648
    %v1650 = vpop.xlane.xlu0 %1649
    %v1651 = vmul.f32 %v1650, 0.125
    %v1652 = vrot.slane %v1621, 4
    %1653 = vrot.lane.b32.xlu0 %v1652, 64
    %v1654 = vpop.permute.xlu0 %1653
    %v1656 = vmul.f32 %v1619, %v1654
    %1658 = vrot.lane.b32.xlu0 %v1656, 64
    %v1659 = vpop.permute.xlu0 %1658
    %vm1661 = vcmask 519170
    %v1662 = vsel %vm1661, %v1659, 0.0
    %1663 = vadd.xlane.f32.xlu0 %v1662
    %v1664 = vpop.xlane.xlu0 %1663
    %v1665 = vmul.f32 %v1664, 0.125
    %v1666 = vrot.slane %v1621, 2
    %1667 = vrot.lane.b32.xlu0 %v1666, 64
    %v1668 = vpop.permute.xlu0 %1667
    %v1670 = vmul.f32 %v1619, %v1668
    %1672 = vrot.lane.b32.xlu0 %v1670, 64
    %v1673 = vpop.permute.xlu0 %1672
    %vm1675 = vcmask 521220
    %v1676 = vsel %vm1675, %v1673, 0.0
    %1677 = vadd.xlane.f32.xlu0 %v1676
    %v1678 = vpop.xlane.xlu0 %1677
    %v1679 = vmul.f32 %v1678, 0.125
    %1680 = vrot.lane.b32.xlu0 %v1621, 64
    %v1681 = vpop.permute.xlu0 %1680
    %v1683 = vmul.f32 %v1619, %v1681
    %1685 = vrot.lane.b32.xlu0 %v1683, 64
    %v1686 = vpop.permute.xlu0 %1685
    %vm1688 = vcmask 523270
    %v1689 = vsel %vm1688, %v1686, 0.0
    %1690 = vadd.xlane.f32.xlu0 %v1689
    %v1691 = vpop.xlane.xlu0 %1690
    %v1692 = vmul.f32 %v1691, 0.125
    %v1693 = vmul.f32 %v1621, %v1640
    %1695 = vrot.lane.b32.xlu0 %v1693, 64
    %v1696 = vpop.permute.xlu0 %1695
    %v1698 = vsel %vm1647, %v1696, 0.0
    %1699 = vadd.xlane.f32.xlu0 %v1698
    %v1700 = vpop.xlane.xlu0 %1699
    %v1701 = vmul.f32 %v1700, 0.125
    %v1702 = vmul.f32 %v1621, %v1654
    %1704 = vrot.lane.b32.xlu0 %v1702, 64
    %v1705 = vpop.permute.xlu0 %1704
    %v1707 = vsel %vm1661, %v1705, 0.0
    %1708 = vadd.xlane.f32.xlu0 %v1707
    %v1709 = vpop.xlane.xlu0 %1708
    %v1710 = vmul.f32 %v1709, 0.125
    %v1711 = vmul.f32 %v1621, %v1668
    %1713 = vrot.lane.b32.xlu0 %v1711, 64
    %v1714 = vpop.permute.xlu0 %1713
    %v1716 = vsel %vm1675, %v1714, 0.0
    %1717 = vadd.xlane.f32.xlu0 %v1716
    %v1718 = vpop.xlane.xlu0 %1717
    %v1719 = vmul.f32 %v1718, 0.125
    %v1720 = vmul.f32 %v1621, %v1681
    %1722 = vrot.lane.b32.xlu0 %v1720, 64
    %v1723 = vpop.permute.xlu0 %1722
    %v1725 = vsel %vm1688, %v1723, 0.0
    %1726 = vadd.xlane.f32.xlu0 %v1725
    %v1727 = vpop.xlane.xlu0 %1726
    %v1728 = vmul.f32 %v1727, 0.125
    %v1730 = vrot.slane %v1665, 2
    %v1732 = vmax.f32 %v1651, %v1730
    %v1734 = vrot.slane %v1679, 4
    %v1736 = vmax.f32 %v1732, %v1734
    %v1738 = vrot.slane %v1692, 6
    %v1740 = vmax.f32 %v1736, %v1738
    %v1741 = vmax.f32 %v1740, %v1701
    %v1743 = vrot.slane %v1710, 2
    %v1745 = vmax.f32 %v1741, %v1743
    %v1747 = vrot.slane %v1719, 4
    %v1749 = vmax.f32 %v1745, %v1747
    %v1751 = vrot.slane %v1728, 6
    %v1753 = vmax.f32 %v1749, %v1751
    %v1754 = vsub.f32 %v1651, %v1753
    %v1755 = vmul.f32 %v1754, 1.442695
    %v1756 = vpow.pop %v1755
    %v1758 = vrot.slane %v1753, 6
    %v1760 = vsub.f32 %v1665, %v1758
    %v1761 = vmul.f32 %v1760, 1.442695
    %v1762 = vpow.pop %v1761
    %v1763 = vrot.slane %v1753, 4
    %v1765 = vsub.f32 %v1679, %v1763
    %v1766 = vmul.f32 %v1765, 1.442695
    %v1767 = vpow.pop %v1766
    %v1768 = vrot.slane %v1753, 2
    %v1770 = vsub.f32 %v1692, %v1768
    %v1771 = vmul.f32 %v1770, 1.442695
    %v1772 = vpow.pop %v1771
    %v1773 = vsub.f32 %v1701, %v1753
    %v1774 = vmul.f32 %v1773, 1.442695
    %v1775 = vpow.pop %v1774
    %v1776 = vsub.f32 %v1710, %v1758
    %v1777 = vmul.f32 %v1776, 1.442695
    %v1778 = vpow.pop %v1777
    %v1779 = vsub.f32 %v1719, %v1763
    %v1780 = vmul.f32 %v1779, 1.442695
    %v1781 = vpow.pop %v1780
    %v1782 = vsub.f32 %v1728, %v1768
    %v1783 = vmul.f32 %v1782, 1.442695
    %v1784 = vpow.pop %v1783
    %1786 = vset.pattern.permute.xlu0 0
    %1787 = vperm.xlu0 %1786, %v1756
    %v1788 = vpop.permute.xlu0 %1787
    %v1790 = vmul.f32 %v1788, %v1633
    %v1792 = vrot.slane %v1762, 2
    %v1794 = vadd.f32 %v1756, %v1792
    %1795 = vset.pattern.permute.xlu0 0
    %1796 = vperm.xlu0 %1795, %v1762
    %v1797 = vpop.permute.xlu0 %1796
    %v1799 = vmul.f32 %v1797, %v1633
    %v1801 = vrot.slane %v1799, 2
    %v1803 = vadd.f32 %v1790, %v1801
    %v1805 = vrot.slane %v1767, 4
    %v1807 = vadd.f32 %v1794, %v1805
    %1808 = vset.pattern.permute.xlu0 0
    %1809 = vperm.xlu0 %1808, %v1767
    %v1810 = vpop.permute.xlu0 %1809
    %v1812 = vmul.f32 %v1810, %v1633
    %v1814 = vrot.slane %v1812, 4
    %v1816 = vadd.f32 %v1803, %v1814
    %v1818 = vrot.slane %v1772, 6
    %v1820 = vadd.f32 %v1807, %v1818
    %1821 = vset.pattern.permute.xlu0 0
    %1822 = vperm.xlu0 %1821, %v1772
    %v1823 = vpop.permute.xlu0 %1822
    %v1825 = vmul.f32 %v1823, %v1633
    %v1827 = vrot.slane %v1825, 6
    %v1829 = vadd.f32 %v1816, %v1827
    %v1830 = vadd.f32 %v1820, %v1775
    %1832 = vset.pattern.permute.xlu0 0
    %1833 = vperm.xlu0 %1832, %v1775
    %v1834 = vpop.permute.xlu0 %1833
    %v1836 = vmul.f32 %v1834, %v1635
    %v1837 = vadd.f32 %v1829, %v1836
    %v1839 = vrot.slane %v1778, 2
    %v1841 = vadd.f32 %v1830, %v1839
    %1842 = vset.pattern.permute.xlu0 0
    %1843 = vperm.xlu0 %1842, %v1778
    %v1844 = vpop.permute.xlu0 %1843
    %v1846 = vmul.f32 %v1844, %v1635
    %v1848 = vrot.slane %v1846, 2
    %v1850 = vadd.f32 %v1837, %v1848
    %v1852 = vrot.slane %v1781, 4
    %v1854 = vadd.f32 %v1841, %v1852
    %1855 = vset.pattern.permute.xlu0 0
    %1856 = vperm.xlu0 %1855, %v1781
    %v1857 = vpop.permute.xlu0 %1856
    %v1859 = vmul.f32 %v1857, %v1635
    %v1861 = vrot.slane %v1859, 4
    %v1863 = vadd.f32 %v1850, %v1861
    %v1865 = vrot.slane %v1784, 6
    %v1867 = vadd.f32 %v1854, %v1865
    %1868 = vset.pattern.permute.xlu0 0
    %1869 = vperm.xlu0 %1868, %v1784
    %v1870 = vpop.permute.xlu0 %1869
    %v1872 = vmul.f32 %v1870, %v1635
    %v1874 = vrot.slane %v1872, 6
    %v1876 = vadd.f32 %v1863, %v1874
    %v1877 = vrcp.pop %v1867
    %1879 = vset.pattern.permute.xlu0 0
    %1880 = vperm.xlu0 %1879, %v1877
    %v1881 = vpop.permute.xlu0 %1880
    %v1883 = vmul.f32 %v1876, %v1881
    %1884 = vrot.lane.b32.xlu0 %v1556, 96
    %v1885 = vpop.permute.xlu0 %1884
    %v1887 = vsel %vm374, %v1883, %v1885
    %v1888 = vpack.c.bf16 %v1887, %v1887
    %v1889 = vperm.slane %v49, 0
    %v1902 = vunpack.c.l.b16 %v33
    %v1903 = vunpack.c.l.b16 %v34
    %v1904 = vunpack.c.l.b16 %v35
    %v1905 = vunpack.c.l.b16 %v36
    %v1906 = vunpack.c.l.b16 %v37
    %v1907 = vunpack.c.l.b16 %v38
    %v1908 = vunpack.c.l.b16 %v39
    %v1909 = vunpack.c.l.b16 %v40
    %v1910 = vunpack.c.l.b16 %v41
    %v1911 = vunpack.c.l.b16 %v42
    %v1912 = vunpack.c.l.b16 %v43
    %v1913 = vunpack.c.l.b16 %v44
    %v1914 = vpack.c.b16 %v1903, %v1902
    %v1915 = vpack.c.b16 %v1905, %v1904
    %v1916 = vpack.c.b16 %v1907, %v1906
    %v1917 = vpack.c.b16 %v1909, %v1908
    %v1918 = vpack.c.b16 %v1911, %v1910
    %v1919 = vpack.c.b16 %v1913, %v1912
    %vm1926 = vcmask 785408
    %v1928 = vsel %vm1926, %v1888, 0
    %1930 = vmatpush.bf16.msra.mxu0 0
    %1931 = vmatpush.bf16.msra.mxu0 0
    %1932 = vmatpush.bf16.msra.mxu0 %v1919
    %1933 = vmatpush.bf16.msra.mxu0 %v1918
    %1934 = vmatpush.bf16.msra.mxu0 %v1917
    %1935 = vmatpush.bf16.msra.mxu0 %v1916
    %1936 = vmatpush.bf16.msra.mxu0 %v1915
    %1937 = vmatpush.bf16.msra.mxu0 %v1914
    %1938 = vmatmul.bf16.gmra.mxu0 %v1928
    %v1939 = vpop.f32.mrf.mxu0
    %v1940 = vadd.f32 %v1889, %v1939
    %v1941 = vpop.f32.mrf.mxu0
    %1942 = vdwg.mxu0
    %vm1943 = vcmask 58368
    %1944 = vst.msk [vmem:[#allocation2] sm:$0x3] %vm1943, %v1940
    // Predicated region
    $region14: #{forward.1} parent=1 // pred_check
      _
    $region15: #{forward.1} parent=1 // pred_check_branch
      %1946 = sbr.rel (0) target = $region17
    $region16: #{forward.1} parent=1 // pred_region
      %1948 = vsyncadd [#allocation3], 0
      %s1950 = sshll.u32 [#allocation2], 4
      %s1951 = int_to_ptr.vmem [resolvable:$true] %s1950
      %s1952 = sshll.u32 %s3, 4
      %s1953 = int_to_ptr.hbm [resolvable:$true] %s1952
      %1955 = dma.vmem_to_hbm [thread:$0]  %s1951, 32, %s1953, [#allocation3]
    $region17: #{forward.1} parent=1 // pred_fallthru
      _
    // Predicated region
    $region18: #{forward.1} parent=1 // pred_check
      _
    $region19: #{forward.1} parent=1 // pred_check_branch
      %1957 = sbr.rel (0) target = $region21
    $region20: #{forward.1} parent=1 // pred_region
      %1959 = dma.done [#allocation3], 32
    $region21: #{forward.1} parent=1 // pred_fallthru
      _
    %1960 = vsyncpa [#allocation3], 1

</llo_original>
